<compile_context>
chip_gen: v5e
topology: v5e:2x2
jax: 0.10.0
libtpu: 0.0.40
codegen_flags: <defaults>
</compile_context>

<pallas_src>
import jax
import jax.numpy as jnp
from jax import lax
from jax.experimental import pallas as pl
from jax.experimental.pallas import tpu as pltpu


def _fused_pool_conv_kernel(x_new_ref, x_first_ref, w_ref, b_ref, o_ref, ring_ref):
    # x_new_ref   : (2, H4, W4, C)   raw padded depth pair -> pooled padded depth d+2
    # x_first_ref : (2, H4, W4, C)   raw padded depth pair 1 (pooled depth 1), d==0 only
    # w_ref       : (3, 9*C, TCO)    K-packed weights  w[kd, (kh*3+kw)*C + ci, co]
    # b_ref       : (1, TCO)         bias (f32)
    # o_ref       : (Ho*Wo, TCO)
    # ring_ref    : (3, Ho*Wo, 9*C)  im2col patch ring for pooled padded depths d..d+2
    d = pl.program_id(1)
    co = pl.program_id(2)

    _, H4, W4, C = x_new_ref.shape
    Hp, Wp = H4 // 2, W4 // 2                  # pooled (padded) sizes = Ho+2, Wo+2
    Ho, Wo = Hp - 2, Wp - 2
    K9 = ring_ref.shape[-1]                    # 9 * C
    TCO = o_ref.shape[-1]                      # Cout tile (128)

    def pool2(x):                              # (2, H4, W4, C) -> (Hp, Wp, C)
        y = jnp.max(x, axis=0)                 # depth pair
        y = jnp.max(y.reshape(Hp, 2, W4, C), axis=1)    # height pair
        return jnp.max(y.reshape(Hp, Wp, 2, C), axis=2)  # width pair

    def patch(x):                              # raw pair -> (Ho*Wo, 9*C) patch slab
        p = pool2(x).astype(ring_ref.dtype)
        taps = [p[kh:kh + Ho, kw:kw + Wo, :] for kh in range(3) for kw in range(3)]
        return jnp.concatenate(taps, axis=-1).reshape(Ho * Wo, K9)

    # ---- pool + im2col exactly once per (n, depth): only on the first Cout tile ----
    @pl.when(co == 0)
    def _():
        @pl.when(d == 0)
        def _():
            ring_ref[0] = jnp.zeros((Ho * Wo, K9), ring_ref.dtype)   # depth zero-halo
            ring_ref[1] = patch(x_first_ref[...])                    # pooled depth 1
        new_patch = patch(x_new_ref[...])                            # pooled depth d+2
        new_slot = (d + 2) % 3
        for s in range(3):                     # predicated static-index stores
            @pl.when(new_slot == s)
            def _(s=s, p=new_patch):
                ring_ref[s] = p

    # ---- conv: 3 K-packed (Ho*Wo, 9C) @ (9C, TCO) MXU dots, f32 accumulation ----
    acc = jnp.zeros((Ho * Wo, TCO), jnp.float32)
    for kd in range(3):
        acc = acc + jnp.dot(ring_ref[(d + kd) % 3], w_ref[kd],
                            preferred_element_type=jnp.float32)
    o_ref[...] = (acc + b_ref[...]).astype(o_ref.dtype)


def downsample_forward(x, w, b, *, compute_dtype=jnp.bfloat16):
    """Downsample.forward: conv3d(maxpool3d(x, 2), padding=1).

    x: (N, C, D, H, W) f32 (NCDHW), w: (C, C, 3, 3, 3) f32 (OIDHW), b: (C,) f32.
    Returns (N, C, D//2, H//2, W//2) f32.  Matmul operands are `compute_dtype`
    (bf16 by default), accumulation / bias / output are f32.
    """
    N, C, D, H, W = x.shape
    Do, Ho, Wo = D // 2, H // 2, W // 2            # floor pooling like PyTorch
    Cp = ((C + 127) // 128) * 128                  # lane-dense output channels
    TCO = 128
    n_co = Cp // TCO

    # NCDHW -> NDHWC, crop to even dims, zero-pad D/H/W by 2, cast to compute dtype.
    x_ndhwc = jnp.transpose(x, (0, 2, 3, 4, 1))[:, :2 * Do, :2 * Ho, :2 * Wo, :]
    xp = jnp.pad(x_ndhwc, ((0, 0), (2, 2), (2, 2), (2, 2), (0, 0))).astype(compute_dtype)
    H4, W4 = 2 * Ho + 4, 2 * Wo + 4

    # Weights: (co, ci, kd, kh, kw) -> (kd, (kh*3+kw)*C + ci, co), pad co -> Cp.
    w2 = jnp.transpose(w, (2, 3, 4, 1, 0)).reshape(3, 9 * C, C)
    w2 = jnp.pad(w2, ((0, 0), (0, 0), (0, Cp - C))).astype(compute_dtype)
    b2 = jnp.pad(b.reshape(1, C), ((0, 0), (0, Cp - C))).astype(jnp.float32)

    M = N * Do * Ho * Wo
    cost = pl.CostEstimate(
        flops=2 * M * 27 * C * C,
        transcendentals=0,
        bytes_accessed=xp.size * xp.dtype.itemsize
        + w2.size * w2.dtype.itemsize + M * Cp * 4)

    out = pl.pallas_call(
        _fused_pool_conv_kernel,
        out_shape=jax.ShapeDtypeStruct((N, Do, Ho * Wo, Cp), jnp.float32),
        grid=(N, Do, n_co),
        in_specs=[
            # new raw depth pair (pooled padded depth d+2); ~1x total input read
            pl.BlockSpec((None, 2, H4, W4, C), lambda n, d, c: (n, d + 2, 0, 0, 0)),
            # bootstrap pair (pooled padded depth 1), consumed only at d == 0
            pl.BlockSpec((None, 2, H4, W4, C), lambda n, d, c: (n, 1, 0, 0, 0)),
            pl.BlockSpec((3, 9 * C, TCO), lambda n, d, c: (0, 0, c)),   # weights
            pl.BlockSpec((1, TCO), lambda n, d, c: (0, c)),             # bias
        ],
        out_specs=pl.BlockSpec((None, None, Ho * Wo, TCO),
                               lambda n, d, c: (n, d, 0, c)),
        scratch_shapes=[pltpu.VMEM((3, Ho * Wo, 9 * C), compute_dtype)],
        compiler_params=pltpu.CompilerParams(
            dimension_semantics=("parallel", "arbitrary", "arbitrary"),
            vmem_limit_bytes=64 * 1024 * 1024),
        cost_estimate=cost,
    )(xp, xp, w2, b2)

    out = out[..., :C].reshape(N, Do, Ho, Wo, C)
    return jnp.transpose(out, (0, 4, 1, 2, 3))                # back to NCDHW


def downsample_reference(x, w, b, compute_dtype=jnp.bfloat16):
    """maxpool (f32) -> conv with `compute_dtype` operands, f32 accumulation."""
    pooled = lax.reduce_window(
        x, -jnp.inf, lax.max,
        window_dimensions=(1, 1, 2, 2, 2),
        window_strides=(1, 1, 2, 2, 2),
        padding="VALID")
    out = lax.conv_general_dilated(
        pooled.astype(compute_dtype), w.astype(compute_dtype),
        window_strides=(1, 1, 1),
        padding=((1, 1), (1, 1), (1, 1)),
        dimension_numbers=("NCDHW", "OIDHW", "NCDHW"),
        preferred_element_type=jnp.float32)
    return out + b.reshape(1, -1, 1, 1, 1)


if __name__ == "__main__":
    key = jax.random.PRNGKey(0)
    kx, kw, kb = jax.random.split(key, 3)

    N, C, D, H, W = 2, 4, 8, 8, 8                 # dim = 4
    x = jax.random.normal(kx, (N, C, D, H, W), dtype=jnp.float32)

    # Deterministic Conv3d(dim, dim, 3) parameters (PyTorch-style uniform init).
    fan_in = C * 3 * 3 * 3
    bound = 1.0 / (fan_in ** 0.5)
    w = jax.random.uniform(kw, (C, C, 3, 3, 3), minval=-bound, maxval=bound,
                           dtype=jnp.float32)
    b = jax.random.uniform(kb, (C,), minval=-bound, maxval=bound,
                           dtype=jnp.float32)

    out = jax.block_until_ready(jax.jit(downsample_forward)(x, w, b))

    ref = downsample_reference(x, w, b)
    assert out.shape == (N, C, D // 2, H // 2, W // 2), out.shape
    err = float(jnp.max(jnp.abs(out - ref)))
    if err > 2e-3:
        raise AssertionError("mismatch vs reference, max abs err %e" % err)

    print("KERNEL_OK")
</pallas_src>

<mosaic_0001>
module attributes {stable_mosaic.version = 11 : i64} {
  func.func @_fused_pool_conv_kernel(%arg0: i32, %arg1: i32, %arg2: i32, %arg3: memref<1x2x12x12x4xbf16, #tpu.memory_space<vmem>>, %arg4: memref<1x2x12x12x4xbf16, #tpu.memory_space<vmem>>, %arg5: memref<3x36x128xbf16, #tpu.memory_space<vmem>>, %arg6: memref<1x128xf32, #tpu.memory_space<vmem>>, %arg7: memref<1x1x16x128xf32, #tpu.memory_space<vmem>>, %arg8: memref<3x16x36xbf16, #tpu.memory_space<vmem>>) attributes {dimension_semantics = [#tpu.dimension_semantics<parallel>, #tpu.dimension_semantics<arbitrary>, #tpu.dimension_semantics<arbitrary>], iteration_bounds = array<i64: 2, 4, 1>, scalar_prefetch = 0 : i64, scratch_operands = 1 : i64, tpu.core_type = #tpu.core_type<tc>, window_params = [{transform_indices = @transform_0, window_bounds = array<i64: 1, 2, 12, 12, 4>}, {transform_indices = @transform_1, window_bounds = array<i64: 1, 2, 12, 12, 4>}, {transform_indices = @transform_2, window_bounds = array<i64: 3, 36, 128>}, {transform_indices = @transform_3, window_bounds = array<i64: 1, 128>}, {transform_indices = @transform_4, window_bounds = array<i64: 1, 1, 16, 128>}]} {
    %c0_i32 = arith.constant 0 : i32
    %0 = arith.cmpi eq, %arg2, %c0_i32 : i32
    %1 = arith.extui %0 : i1 to i32
    %c0_i32_0 = arith.constant 0 : i32
    %2 = arith.cmpi ne, %1, %c0_i32_0 : i32
    scf.if %2 {
      %c0_i32_40 = arith.constant 0 : i32
      %64 = arith.cmpi eq, %arg1, %c0_i32_40 : i32
      %65 = arith.extui %64 : i1 to i32
      %c0_i32_41 = arith.constant 0 : i32
      %66 = arith.cmpi ne, %65, %c0_i32_41 : i32
      scf.if %66 {
        %cst_63 = arith.constant 0.000000e+00 : bf16
        %105 = vector.broadcast %cst_63 : bf16 to vector<16x36xbf16>
        %c0_64 = arith.constant 0 : index
        %c0_65 = arith.constant 0 : index
        %c0_66 = arith.constant 0 : index
        %106 = vector.load %arg8[%c0_64, %c0_65, %c0_66] : memref<3x16x36xbf16, #tpu.memory_space<vmem>>, vector<1x16x36xbf16>
        %107 = vector.shape_cast %106 : vector<1x16x36xbf16> to vector<16x36xbf16>
        %108 = vector.shape_cast %105 : vector<16x36xbf16> to vector<1x16x36xbf16>
        tpu.vector_store %arg8[%c0_64, %c0_65, %c0_66], %108 {strides = array<i32>} : memref<3x16x36xbf16, #tpu.memory_space<vmem>>, vector<1x16x36xbf16>,
        %c0_67 = arith.constant 0 : index
        %c0_68 = arith.constant 0 : index
        %c0_69 = arith.constant 0 : index
        %c0_70 = arith.constant 0 : index
        %c0_71 = arith.constant 0 : index
        %109 = vector.load %arg4[%c0_67, %c0_68, %c0_69, %c0_70, %c0_71] : memref<1x2x12x12x4xbf16, #tpu.memory_space<vmem>>, vector<1x2x12x12x4xbf16>
        %110 = vector.shape_cast %109 : vector<1x2x12x12x4xbf16> to vector<2x12x12x4xbf16>
        %cst_72 = arith.constant dense<0xFF80> : vector<12x12x4xbf16>
        %111 = vector.multi_reduction <maximumf>, %110, %cst_72 [0] : vector<2x12x12x4xbf16> to vector<12x12x4xbf16>
        %112 = vector.shape_cast %111 : vector<12x12x4xbf16> to vector<6x2x12x4xbf16>
        %cst_73 = arith.constant dense<0xFF80> : vector<6x12x4xbf16>
        %113 = vector.multi_reduction <maximumf>, %112, %cst_73 [1] : vector<6x2x12x4xbf16> to vector<6x12x4xbf16>
        %114 = vector.shape_cast %113 : vector<6x12x4xbf16> to vector<6x6x2x4xbf16>
        %cst_74 = arith.constant dense<0xFF80> : vector<6x6x4xbf16>
        %115 = vector.multi_reduction <maximumf>, %114, %cst_74 [2] : vector<6x6x2x4xbf16> to vector<6x6x4xbf16>
        %116 = vector.extract_strided_slice %115 {offsets = [0, 0, 0], sizes = [4, 4, 4], strides = [1, 1, 1]} : vector<6x6x4xbf16> to vector<4x4x4xbf16>
        %117 = vector.extract_strided_slice %115 {offsets = [0, 1, 0], sizes = [4, 4, 4], strides = [1, 1, 1]} : vector<6x6x4xbf16> to vector<4x4x4xbf16>
        %118 = vector.extract_strided_slice %115 {offsets = [0, 2, 0], sizes = [4, 4, 4], strides = [1, 1, 1]} : vector<6x6x4xbf16> to vector<4x4x4xbf16>
        %119 = vector.extract_strided_slice %115 {offsets = [1, 0, 0], sizes = [4, 4, 4], strides = [1, 1, 1]} : vector<6x6x4xbf16> to vector<4x4x4xbf16>
        %120 = vector.extract_strided_slice %115 {offsets = [1, 1, 0], sizes = [4, 4, 4], strides = [1, 1, 1]} : vector<6x6x4xbf16> to vector<4x4x4xbf16>
        %121 = vector.extract_strided_slice %115 {offsets = [1, 2, 0], sizes = [4, 4, 4], strides = [1, 1, 1]} : vector<6x6x4xbf16> to vector<4x4x4xbf16>
        %122 = vector.extract_strided_slice %115 {offsets = [2, 0, 0], sizes = [4, 4, 4], strides = [1, 1, 1]} : vector<6x6x4xbf16> to vector<4x4x4xbf16>
        %123 = vector.extract_strided_slice %115 {offsets = [2, 1, 0], sizes = [4, 4, 4], strides = [1, 1, 1]} : vector<6x6x4xbf16> to vector<4x4x4xbf16>
        %124 = vector.extract_strided_slice %115 {offsets = [2, 2, 0], sizes = [4, 4, 4], strides = [1, 1, 1]} : vector<6x6x4xbf16> to vector<4x4x4xbf16>
        %125 = tpu.concatenate %116, %117, %118, %119, %120, %121, %122, %123, %124 in 2 : vector<4x4x4xbf16>, vector<4x4x4xbf16>, vector<4x4x4xbf16>, vector<4x4x4xbf16>, vector<4x4x4xbf16>, vector<4x4x4xbf16>, vector<4x4x4xbf16>, vector<4x4x4xbf16>, vector<4x4x4xbf16> -> vector<4x4x36xbf16>
        %126 = vector.shape_cast %125 : vector<4x4x36xbf16> to vector<16x36xbf16>
        %c1_75 = arith.constant 1 : index
        %c0_76 = arith.constant 0 : index
        %c0_77 = arith.constant 0 : index
        %127 = vector.load %arg8[%c1_75, %c0_76, %c0_77] : memref<3x16x36xbf16, #tpu.memory_space<vmem>>, vector<1x16x36xbf16>
        %128 = vector.shape_cast %127 : vector<1x16x36xbf16> to vector<16x36xbf16>
        %129 = vector.shape_cast %126 : vector<16x36xbf16> to vector<1x16x36xbf16>
        tpu.vector_store %arg8[%c1_75, %c0_76, %c0_77], %129 {strides = array<i32>} : memref<3x16x36xbf16, #tpu.memory_space<vmem>>, vector<1x16x36xbf16>,
      } else {
      }
      %c0_42 = arith.constant 0 : index
      %c0_43 = arith.constant 0 : index
      %c0_44 = arith.constant 0 : index
      %c0_45 = arith.constant 0 : index
      %c0_46 = arith.constant 0 : index
      %67 = vector.load %arg3[%c0_42, %c0_43, %c0_44, %c0_45, %c0_46] : memref<1x2x12x12x4xbf16, #tpu.memory_space<vmem>>, vector<1x2x12x12x4xbf16>
      %68 = vector.shape_cast %67 : vector<1x2x12x12x4xbf16> to vector<2x12x12x4xbf16>
      %cst_47 = arith.constant dense<0xFF80> : vector<12x12x4xbf16>
      %69 = vector.multi_reduction <maximumf>, %68, %cst_47 [0] : vector<2x12x12x4xbf16> to vector<12x12x4xbf16>
      %70 = vector.shape_cast %69 : vector<12x12x4xbf16> to vector<6x2x12x4xbf16>
      %cst_48 = arith.constant dense<0xFF80> : vector<6x12x4xbf16>
      %71 = vector.multi_reduction <maximumf>, %70, %cst_48 [1] : vector<6x2x12x4xbf16> to vector<6x12x4xbf16>
      %72 = vector.shape_cast %71 : vector<6x12x4xbf16> to vector<6x6x2x4xbf16>
      %cst_49 = arith.constant dense<0xFF80> : vector<6x6x4xbf16>
      %73 = vector.multi_reduction <maximumf>, %72, %cst_49 [2] : vector<6x6x2x4xbf16> to vector<6x6x4xbf16>
      %74 = vector.extract_strided_slice %73 {offsets = [0, 0, 0], sizes = [4, 4, 4], strides = [1, 1, 1]} : vector<6x6x4xbf16> to vector<4x4x4xbf16>
      %75 = vector.extract_strided_slice %73 {offsets = [0, 1, 0], sizes = [4, 4, 4], strides = [1, 1, 1]} : vector<6x6x4xbf16> to vector<4x4x4xbf16>
      %76 = vector.extract_strided_slice %73 {offsets = [0, 2, 0], sizes = [4, 4, 4], strides = [1, 1, 1]} : vector<6x6x4xbf16> to vector<4x4x4xbf16>
      %77 = vector.extract_strided_slice %73 {offsets = [1, 0, 0], sizes = [4, 4, 4], strides = [1, 1, 1]} : vector<6x6x4xbf16> to vector<4x4x4xbf16>
      %78 = vector.extract_strided_slice %73 {offsets = [1, 1, 0], sizes = [4, 4, 4], strides = [1, 1, 1]} : vector<6x6x4xbf16> to vector<4x4x4xbf16>
      %79 = vector.extract_strided_slice %73 {offsets = [1, 2, 0], sizes = [4, 4, 4], strides = [1, 1, 1]} : vector<6x6x4xbf16> to vector<4x4x4xbf16>
      %80 = vector.extract_strided_slice %73 {offsets = [2, 0, 0], sizes = [4, 4, 4], strides = [1, 1, 1]} : vector<6x6x4xbf16> to vector<4x4x4xbf16>
      %81 = vector.extract_strided_slice %73 {offsets = [2, 1, 0], sizes = [4, 4, 4], strides = [1, 1, 1]} : vector<6x6x4xbf16> to vector<4x4x4xbf16>
      %82 = vector.extract_strided_slice %73 {offsets = [2, 2, 0], sizes = [4, 4, 4], strides = [1, 1, 1]} : vector<6x6x4xbf16> to vector<4x4x4xbf16>
      %83 = tpu.concatenate %74, %75, %76, %77, %78, %79, %80, %81, %82 in 2 : vector<4x4x4xbf16>, vector<4x4x4xbf16>, vector<4x4x4xbf16>, vector<4x4x4xbf16>, vector<4x4x4xbf16>, vector<4x4x4xbf16>, vector<4x4x4xbf16>, vector<4x4x4xbf16>, vector<4x4x4xbf16> -> vector<4x4x36xbf16>
      %84 = vector.shape_cast %83 : vector<4x4x36xbf16> to vector<16x36xbf16>
      %c2_i32_50 = arith.constant 2 : i32
      %85 = arith.addi %arg1, %c2_i32_50 : i32
      %c3_i32_51 = arith.constant 3 : i32
      %c0_i32_52 = arith.constant 0 : i32
      %86 = arith.cmpi eq, %c3_i32_51, %c0_i32_52 : i32
      %c1_i32_53 = arith.constant 1 : i32
      %87 = arith.select %86, %c1_i32_53, %c3_i32_51 : i32
      %88 = arith.remsi %85, %87 : i32
      %c0_i32_54 = arith.constant 0 : i32
      %89 = arith.cmpi ne, %88, %c0_i32_54 : i32
      %c0_i32_55 = arith.constant 0 : i32
      %90 = arith.cmpi slt, %88, %c0_i32_55 : i32
      %c0_i32_56 = arith.constant 0 : i32
      %91 = arith.cmpi slt, %87, %c0_i32_56 : i32
      %92 = arith.xori %90, %91 : i1
      %93 = arith.andi %92, %89 : i1
      %94 = arith.addi %88, %87 : i32
      %95 = arith.select %93, %94, %88 : i32
      %c0_i32_57 = arith.constant 0 : i32
      %96 = arith.cmpi eq, %95, %c0_i32_57 : i32
      %97 = arith.extui %96 : i1 to i32
      %c0_i32_58 = arith.constant 0 : i32
      %98 = arith.cmpi ne, %97, %c0_i32_58 : i32
      scf.if %98 {
        %c0_63 = arith.constant 0 : index
        %c0_64 = arith.constant 0 : index
        %c0_65 = arith.constant 0 : index
        %105 = vector.load %arg8[%c0_63, %c0_64, %c0_65] : memref<3x16x36xbf16, #tpu.memory_space<vmem>>, vector<1x16x36xbf16>
        %106 = vector.shape_cast %105 : vector<1x16x36xbf16> to vector<16x36xbf16>
        %107 = vector.shape_cast %84 : vector<16x36xbf16> to vector<1x16x36xbf16>
        tpu.vector_store %arg8[%c0_63, %c0_64, %c0_65], %107 {strides = array<i32>} : memref<3x16x36xbf16, #tpu.memory_space<vmem>>, vector<1x16x36xbf16>,
      } else {
      }
      %c1_i32_59 = arith.constant 1 : i32
      %99 = arith.cmpi eq, %95, %c1_i32_59 : i32
      %100 = arith.extui %99 : i1 to i32
      %c0_i32_60 = arith.constant 0 : i32
      %101 = arith.cmpi ne, %100, %c0_i32_60 : i32
      scf.if %101 {
        %c1_63 = arith.constant 1 : index
        %c0_64 = arith.constant 0 : index
        %c0_65 = arith.constant 0 : index
        %105 = vector.load %arg8[%c1_63, %c0_64, %c0_65] : memref<3x16x36xbf16, #tpu.memory_space<vmem>>, vector<1x16x36xbf16>
        %106 = vector.shape_cast %105 : vector<1x16x36xbf16> to vector<16x36xbf16>
        %107 = vector.shape_cast %84 : vector<16x36xbf16> to vector<1x16x36xbf16>
        tpu.vector_store %arg8[%c1_63, %c0_64, %c0_65], %107 {strides = array<i32>} : memref<3x16x36xbf16, #tpu.memory_space<vmem>>, vector<1x16x36xbf16>,
      } else {
      }
      %c2_i32_61 = arith.constant 2 : i32
      %102 = arith.cmpi eq, %95, %c2_i32_61 : i32
      %103 = arith.extui %102 : i1 to i32
      %c0_i32_62 = arith.constant 0 : i32
      %104 = arith.cmpi ne, %103, %c0_i32_62 : i32
      scf.if %104 {
        %c2_63 = arith.constant 2 : index
        %c0_64 = arith.constant 0 : index
        %c0_65 = arith.constant 0 : index
        %105 = vector.load %arg8[%c2_63, %c0_64, %c0_65] : memref<3x16x36xbf16, #tpu.memory_space<vmem>>, vector<1x16x36xbf16>
        %106 = vector.shape_cast %105 : vector<1x16x36xbf16> to vector<16x36xbf16>
        %107 = vector.shape_cast %84 : vector<16x36xbf16> to vector<1x16x36xbf16>
        tpu.vector_store %arg8[%c2_63, %c0_64, %c0_65], %107 {strides = array<i32>} : memref<3x16x36xbf16, #tpu.memory_space<vmem>>, vector<1x16x36xbf16>,
      } else {
      }
    } else {
    }
    %cst = arith.constant 0.000000e+00 : f32
    %3 = vector.broadcast %cst : f32 to vector<16x128xf32>
    %c0_i32_1 = arith.constant 0 : i32
    %4 = arith.addi %arg1, %c0_i32_1 : i32
    %c3_i32 = arith.constant 3 : i32
    %c0_i32_2 = arith.constant 0 : i32
    %5 = arith.cmpi eq, %c3_i32, %c0_i32_2 : i32
    %c1_i32 = arith.constant 1 : i32
    %6 = arith.select %5, %c1_i32, %c3_i32 : i32
    %7 = arith.remsi %4, %6 : i32
    %c0_i32_3 = arith.constant 0 : i32
    %8 = arith.cmpi ne, %7, %c0_i32_3 : i32
    %c0_i32_4 = arith.constant 0 : i32
    %9 = arith.cmpi slt, %7, %c0_i32_4 : i32
    %c0_i32_5 = arith.constant 0 : i32
    %10 = arith.cmpi slt, %6, %c0_i32_5 : i32
    %11 = arith.xori %9, %10 : i1
    %12 = arith.andi %11, %8 : i1
    %13 = arith.addi %7, %6 : i32
    %14 = arith.select %12, %13, %7 : i32
    %15 = arith.index_cast %14 : i32 to index
    %c0 = arith.constant 0 : index
    %c0_6 = arith.constant 0 : index
    %16 = vector.load %arg8[%15, %c0, %c0_6] : memref<3x16x36xbf16, #tpu.memory_space<vmem>>, vector<1x16x36xbf16>
    %17 = vector.shape_cast %16 : vector<1x16x36xbf16> to vector<16x36xbf16>
    %c0_7 = arith.constant 0 : index
    %c0_8 = arith.constant 0 : index
    %c0_9 = arith.constant 0 : index
    %18 = vector.load %arg5[%c0_7, %c0_8, %c0_9] : memref<3x36x128xbf16, #tpu.memory_space<vmem>>, vector<1x36x128xbf16>
    %19 = vector.shape_cast %18 : vector<1x36x128xbf16> to vector<36x128xbf16>
    %cst_10 = arith.constant dense<0.000000e+00> : vector<16x128xf32>
    %20 = tpu.matmul %17, %19, %cst_10 {dimension_numbers = #tpu.dot_dimension_numbers<[1], [0], [0], [1], [0, 0, 1, 1], [], []>} : vector<16x36xbf16>, vector<36x128xbf16>, vector<16x128xf32> -> vector<16x128xf32>
    %21 = arith.addf %3, %20 : vector<16x128xf32>
    %c1_i32_11 = arith.constant 1 : i32
    %22 = arith.addi %arg1, %c1_i32_11 : i32
    %c3_i32_12 = arith.constant 3 : i32
    %c0_i32_13 = arith.constant 0 : i32
    %23 = arith.cmpi eq, %c3_i32_12, %c0_i32_13 : i32
    %c1_i32_14 = arith.constant 1 : i32
    %24 = arith.select %23, %c1_i32_14, %c3_i32_12 : i32
    %25 = arith.remsi %22, %24 : i32
    %c0_i32_15 = arith.constant 0 : i32
    %26 = arith.cmpi ne, %25, %c0_i32_15 : i32
    %c0_i32_16 = arith.constant 0 : i32
    %27 = arith.cmpi slt, %25, %c0_i32_16 : i32
    %c0_i32_17 = arith.constant 0 : i32
    %28 = arith.cmpi slt, %24, %c0_i32_17 : i32
    %29 = arith.xori %27, %28 : i1
    %30 = arith.andi %29, %26 : i1
    %31 = arith.addi %25, %24 : i32
    %32 = arith.select %30, %31, %25 : i32
    %33 = arith.index_cast %32 : i32 to index
    %c0_18 = arith.constant 0 : index
    %c0_19 = arith.constant 0 : index
    %34 = vector.load %arg8[%33, %c0_18, %c0_19] : memref<3x16x36xbf16, #tpu.memory_space<vmem>>, vector<1x16x36xbf16>
    %35 = vector.shape_cast %34 : vector<1x16x36xbf16> to vector<16x36xbf16>
    %c1 = arith.constant 1 : index
    %c0_20 = arith.constant 0 : index
    %c0_21 = arith.constant 0 : index
    %36 = vector.load %arg5[%c1, %c0_20, %c0_21] : memref<3x36x128xbf16, #tpu.memory_space<vmem>>, vector<1x36x128xbf16>
    %37 = vector.shape_cast %36 : vector<1x36x128xbf16> to vector<36x128xbf16>
    %cst_22 = arith.constant dense<0.000000e+00> : vector<16x128xf32>
    %38 = tpu.matmul %35, %37, %cst_22 {dimension_numbers = #tpu.dot_dimension_numbers<[1], [0], [0], [1], [0, 0, 1, 1], [], []>} : vector<16x36xbf16>, vector<36x128xbf16>, vector<16x128xf32> -> vector<16x128xf32>
    %39 = arith.addf %21, %38 : vector<16x128xf32>
    %c2_i32 = arith.constant 2 : i32
    %40 = arith.addi %arg1, %c2_i32 : i32
    %c3_i32_23 = arith.constant 3 : i32
    %c0_i32_24 = arith.constant 0 : i32
    %41 = arith.cmpi eq, %c3_i32_23, %c0_i32_24 : i32
    %c1_i32_25 = arith.constant 1 : i32
    %42 = arith.select %41, %c1_i32_25, %c3_i32_23 : i32
    %43 = arith.remsi %40, %42 : i32
    %c0_i32_26 = arith.constant 0 : i32
    %44 = arith.cmpi ne, %43, %c0_i32_26 : i32
    %c0_i32_27 = arith.constant 0 : i32
    %45 = arith.cmpi slt, %43, %c0_i32_27 : i32
    %c0_i32_28 = arith.constant 0 : i32
    %46 = arith.cmpi slt, %42, %c0_i32_28 : i32
    %47 = arith.xori %45, %46 : i1
    %48 = arith.andi %47, %44 : i1
    %49 = arith.addi %43, %42 : i32
    %50 = arith.select %48, %49, %43 : i32
    %51 = arith.index_cast %50 : i32 to index
    %c0_29 = arith.constant 0 : index
    %c0_30 = arith.constant 0 : index
    %52 = vector.load %arg8[%51, %c0_29, %c0_30] : memref<3x16x36xbf16, #tpu.memory_space<vmem>>, vector<1x16x36xbf16>
    %53 = vector.shape_cast %52 : vector<1x16x36xbf16> to vector<16x36xbf16>
    %c2 = arith.constant 2 : index
    %c0_31 = arith.constant 0 : index
    %c0_32 = arith.constant 0 : index
    %54 = vector.load %arg5[%c2, %c0_31, %c0_32] : memref<3x36x128xbf16, #tpu.memory_space<vmem>>, vector<1x36x128xbf16>
    %55 = vector.shape_cast %54 : vector<1x36x128xbf16> to vector<36x128xbf16>
    %cst_33 = arith.constant dense<0.000000e+00> : vector<16x128xf32>
    %56 = tpu.matmul %53, %55, %cst_33 {dimension_numbers = #tpu.dot_dimension_numbers<[1], [0], [0], [1], [0, 0, 1, 1], [], []>} : vector<16x36xbf16>, vector<36x128xbf16>, vector<16x128xf32> -> vector<16x128xf32>
    %57 = arith.addf %39, %56 : vector<16x128xf32>
    %c0_34 = arith.constant 0 : index
    %c0_35 = arith.constant 0 : index
    %58 = vector.load %arg6[%c0_34, %c0_35] : memref<1x128xf32, #tpu.memory_space<vmem>>, vector<1x128xf32>
    %59 = vector.broadcast %58 : vector<1x128xf32> to vector<16x128xf32>
    %60 = arith.addf %57, %59 : vector<16x128xf32>
    %c0_36 = arith.constant 0 : index
    %c0_37 = arith.constant 0 : index
    %c0_38 = arith.constant 0 : index
    %c0_39 = arith.constant 0 : index
    %61 = vector.load %arg7[%c0_36, %c0_37, %c0_38, %c0_39] : memref<1x1x16x128xf32, #tpu.memory_space<vmem>>, vector<1x1x16x128xf32>
    %62 = vector.shape_cast %61 : vector<1x1x16x128xf32> to vector<16x128xf32>
    %63 = vector.shape_cast %60 : vector<16x128xf32> to vector<1x1x16x128xf32>
    tpu.vector_store %arg7[%c0_36, %c0_37, %c0_38, %c0_39], %63 {strides = array<i32>} : memref<1x1x16x128xf32, #tpu.memory_space<vmem>>, vector<1x1x16x128xf32>,
    return
  }
  func.func @transform_0(%arg0: i32, %arg1: i32, %arg2: i32) -> (i32, i32, i32, i32, i32) {
    %c2_i32 = arith.constant 2 : i32
    %0 = arith.addi %arg1, %c2_i32 : i32
    %c0_i32 = arith.constant 0 : i32
    %c0_i32_0 = arith.constant 0 : i32
    %c0_i32_1 = arith.constant 0 : i32
    %c0_i32_2 = arith.constant 0 : i32
    return %arg0, %0, %c0_i32, %c0_i32_0, %c0_i32_1 : i32, i32, i32, i32, i32
  }
  func.func @transform_1(%arg0: i32, %arg1: i32, %arg2: i32) -> (i32, i32, i32, i32, i32) {
    %c1_i32 = arith.constant 1 : i32
    %c0_i32 = arith.constant 0 : i32
    %c0_i32_0 = arith.constant 0 : i32
    %c0_i32_1 = arith.constant 0 : i32
    %c0_i32_2 = arith.constant 0 : i32
    return %arg0, %c1_i32, %c0_i32, %c0_i32_0, %c0_i32_1 : i32, i32, i32, i32, i32
  }
  func.func @transform_2(%arg0: i32, %arg1: i32, %arg2: i32) -> (i32, i32, i32) {
    %c0_i32 = arith.constant 0 : i32
    %c0_i32_0 = arith.constant 0 : i32
    %c0_i32_1 = arith.constant 0 : i32
    return %c0_i32, %c0_i32_0, %arg2 : i32, i32, i32
  }
  func.func @transform_3(%arg0: i32, %arg1: i32, %arg2: i32) -> (i32, i32) {
    %c0_i32 = arith.constant 0 : i32
    %c0_i32_0 = arith.constant 0 : i32
    return %c0_i32, %arg2 : i32, i32
  }
  func.func @transform_4(%arg0: i32, %arg1: i32, %arg2: i32) -> (i32, i32, i32, i32) {
    %c0_i32 = arith.constant 0 : i32
    %c0_i32_0 = arith.constant 0 : i32
    return %arg0, %arg1, %c0_i32, %arg2 : i32, i32, i32, i32
  }
}

</mosaic_0001>

<llo_original>
// kernel: downsample_forward.1
$region0: #{downsample_forward.1}
  #allocation0 [shape = 'u32[]', space=smem, size = 0x4, offset = 0x4, fixed_abs, tag = 'smem constant byte address 0x4 - core index']
  #allocation1 [shape = 'u32[72,128]{1,0:T(1,128)}', space=vmem, size = 0x9000, scoped, tag = 'internal scratch']
  #allocation2 [shape = 'bf16[3,16,36]{2,1,0:T(8,128)(2,1)}', space=vmem, size = 0x3000, scoped, tag = 'scratch operand']
  %s0 = inlined_call_operand.vmem [shape: bf16[2,12,12,12,4], index: 0, kind: input, shape index: {}, may-alias: {0,1}]
  %s1 = inlined_call_operand.vmem [shape: bf16[2,12,12,12,4], index: 1, kind: input, shape index: {}, may-alias: {0,1}]
  %s2 = inlined_call_operand.vmem [shape: bf16[3,36,128], index: 2, kind: input, shape index: {}]
  %s3 = inlined_call_operand.vmem [shape: f32[1,128], index: 3, kind: input, shape index: {}]
  %s4 = inlined_call_operand.vmem [shape: f32[2,4,16,128], index: 4, kind: output, shape index: {}]
  %s5 = sld [smem:[#allocation0]]
  $region69: #{downsample_forward.1} parent=0
    _
  %s7 = ssub.s32 1, %s5
  %s8 = scalar_select 0, %s7, %s5
  loop: start=0, step=1, limit=10
  $region2: #{downsample_forward.1} parent=0 // loop_pre_header
    _
  $region3: #{downsample_forward.1} parent=0 // loop_header
    %s10 = sphi 0, %s14
    %p11 = scmp.ge.s32.totalorder %s10, 10
    %s17 = sphi 0, %s36
    %s18 = sphi 0, %s32
    %s19 = sphi 0, %s28
    %s20 = sphi 0, %s17
    %s21 = sphi 0, %s18
    %s22 = sphi 0, %s19
    %s23 = sphi 0, %s20
    %s24 = sphi 0, %s21
    %s25 = sphi 0, %s22
    %s43 = sphi 0, %s45
    %s46 = sphi 0, %s43
    %s47 = sphi 0, %s46
    %s63 = sphi 0, %s47
    %s69 = sphi 0, %s71
    %s72 = sphi 0, %s69
    %s73 = sphi 0, %s72
    %s89 = sphi 0, %s73
    %s95 = sphi 0, %s97
    %s98 = sphi 0, %s95
    %s99 = sphi 0, %s98
    %s115 = sphi 0, %s99
    %s121 = sphi 0, %s123
    %s124 = sphi 0, %s121
    %s125 = sphi 0, %s124
    %s141 = sphi 0, %s125
    %s151 = sphi 0, %s153
    %s154 = sphi 0, %s151
    %s155 = sphi 0, %s154
    %s171 = sphi 0, %s155
  $region4: #{downsample_forward.1} parent=0 // loop_header_branch
    %13 = sbr.rel (%p11) target = $region8
  $region5: #{downsample_forward.1} parent=0 // loop_body
    %s15 = ssub.s32 %s10, 1
    %s16 = ssub.s32 %s10, 2
    %s26 = sadd.s32 1, %s19
    %p27 = scmp.ge.s32.totalorder %s26, 1
    %s28 = scalar_select %p27, 0, %s26
    %s29 = sadd.s32 1, %s18
    %s30 = scalar_select %p27, %s29, %s18
    %p31 = scmp.ge.s32.totalorder %s30, 4
    %s32 = scalar_select %p31, 0, %s30
    %s33 = sadd.s32 1, %s17
    %s34 = scalar_select %p31, %s33, %s17
    %p35 = scmp.ge.s32.totalorder %s34, 2
    %s36 = scalar_select %p35, 0, %s34
    %s37 = sadd.s32 %s18, 2
    %s38 = sadd.s32 %s32, 2
    %s39 = ssub.s32 %s17, %s36
    %s40 = ssub.s32 %s37, %s38
    %s41 = sor.u32 %s39, %s40
    %p42 = scmp.eq.s32.totalorder %s41, 0
    %s44 = sadd.s32 %s43, 1
    %s45 = scalar_select %p42, %s43, %s44
    %p48 = pneg %p42
    %p49 = scmp.eq.s32.totalorder %s10, 7
    %p50 = por %p48, %p49
    %p51 = scmp.ne.s32.totalorder %s43, %s46
    %p52 = scmp.eq.s32.totalorder %s10, 0
    %p53 = por %p51, %p52
    %p54 = scmp.ne.s32.totalorder %s43, %s46
    %p55 = scmp.eq.s32.totalorder %s15, 7
    %p56 = por %p54, %p55
    %p57 = scmp.ne.s32.totalorder %s46, %s47
    %p58 = scmp.eq.s32.totalorder %s15, 0
    %p59 = por %p57, %p58
    %p60 = scmp.ne.s32.totalorder %s46, %s47
    %p61 = scmp.eq.s32.totalorder %s16, 7
    %p62 = por %p60, %p61
    %p64 = scmp.ne.s32.totalorder %s47, %s63
    %p65 = scmp.eq.s32.totalorder %s16, 0
    %p66 = por %p64, %p65
    %s67 = ssub.s32 %s17, %s36
    %p68 = scmp.eq.s32.totalorder %s67, 0
    %s70 = sadd.s32 %s69, 1
    %s71 = scalar_select %p68, %s69, %s70
    %p74 = pneg %p68
    %p75 = scmp.eq.s32.totalorder %s10, 7
    %p76 = por %p74, %p75
    %p77 = scmp.ne.s32.totalorder %s69, %s72
    %p78 = scmp.eq.s32.totalorder %s10, 0
    %p79 = por %p77, %p78
    %p80 = scmp.ne.s32.totalorder %s69, %s72
    %p81 = scmp.eq.s32.totalorder %s15, 7
    %p82 = por %p80, %p81
    %p83 = scmp.ne.s32.totalorder %s72, %s73
    %p84 = scmp.eq.s32.totalorder %s15, 0
    %p85 = por %p83, %p84
    %p86 = scmp.ne.s32.totalorder %s72, %s73
    %p87 = scmp.eq.s32.totalorder %s16, 7
    %p88 = por %p86, %p87
    %p90 = scmp.ne.s32.totalorder %s73, %s89
    %p91 = scmp.eq.s32.totalorder %s16, 0
    %p92 = por %p90, %p91
    %s93 = ssub.s32 %s19, %s28
    %p94 = scmp.eq.s32.totalorder %s93, 0
    %s96 = sadd.s32 %s95, 1
    %s97 = scalar_select %p94, %s95, %s96
    %p100 = pneg %p94
    %p101 = scmp.eq.s32.totalorder %s10, 7
    %p102 = por %p100, %p101
    %p103 = scmp.ne.s32.totalorder %s95, %s98
    %p104 = scmp.eq.s32.totalorder %s10, 0
    %p105 = por %p103, %p104
    %p106 = scmp.ne.s32.totalorder %s95, %s98
    %p107 = scmp.eq.s32.totalorder %s15, 7
    %p108 = por %p106, %p107
    %p109 = scmp.ne.s32.totalorder %s98, %s99
    %p110 = scmp.eq.s32.totalorder %s15, 0
    %p111 = por %p109, %p110
    %p112 = scmp.ne.s32.totalorder %s98, %s99
    %p113 = scmp.eq.s32.totalorder %s16, 7
    %p114 = por %p112, %p113
    %p116 = scmp.ne.s32.totalorder %s99, %s115
    %p117 = scmp.eq.s32.totalorder %s16, 0
    %p118 = por %p116, %p117
    %s119 = ssub.s32 %s19, %s28
    %p120 = scmp.eq.s32.totalorder %s119, 0
    %s122 = sadd.s32 %s121, 1
    %s123 = scalar_select %p120, %s121, %s122
    %p126 = pneg %p120
    %p127 = scmp.eq.s32.totalorder %s10, 7
    %p128 = por %p126, %p127
    %p129 = scmp.ne.s32.totalorder %s121, %s124
    %p130 = scmp.eq.s32.totalorder %s10, 0
    %p131 = por %p129, %p130
    %p132 = scmp.ne.s32.totalorder %s121, %s124
    %p133 = scmp.eq.s32.totalorder %s15, 7
    %p134 = por %p132, %p133
    %p135 = scmp.ne.s32.totalorder %s124, %s125
    %p136 = scmp.eq.s32.totalorder %s15, 0
    %p137 = por %p135, %p136
    %p138 = scmp.ne.s32.totalorder %s124, %s125
    %p139 = scmp.eq.s32.totalorder %s16, 7
    %p140 = por %p138, %p139
    %p142 = scmp.ne.s32.totalorder %s125, %s141
    %p143 = scmp.eq.s32.totalorder %s16, 0
    %p144 = por %p142, %p143
    %s145 = ssub.s32 %s17, %s36
    %s146 = ssub.s32 %s18, %s32
    %s147 = sor.u32 %s145, %s146
    %s148 = ssub.s32 %s19, %s28
    %s149 = sor.u32 %s147, %s148
    %p150 = scmp.eq.s32.totalorder %s149, 0
    %s152 = sadd.s32 %s151, 1
    %s153 = scalar_select %p150, %s151, %s152
    %p156 = pneg %p150
    %p157 = scmp.eq.s32.totalorder %s10, 7
    %p158 = por %p156, %p157
    %p159 = scmp.ne.s32.totalorder %s151, %s154
    %p160 = scmp.eq.s32.totalorder %s10, 0
    %p161 = por %p159, %p160
    %p162 = scmp.ne.s32.totalorder %s151, %s154
    %p163 = scmp.eq.s32.totalorder %s15, 7
    %p164 = por %p162, %p163
    %p165 = scmp.ne.s32.totalorder %s154, %s155
    %p166 = scmp.eq.s32.totalorder %s15, 0
    %p167 = por %p165, %p166
    %p168 = scmp.ne.s32.totalorder %s154, %s155
    %p169 = scmp.eq.s32.totalorder %s16, 7
    %p170 = por %p168, %p169
    %p172 = scmp.ne.s32.totalorder %s155, %s171
    %p173 = scmp.eq.s32.totalorder %s16, 0
    %p174 = por %p172, %p173
    %p175 = scmp.le.s32.totalorder 1, %s10
    %p176 = scmp.lt.s32.totalorder %s10, 9
    %p177 = pnand %p175, %p176
    %p178 = pneg %p177
    // Predicated region
    $region9: #{downsample_forward.1} parent=5 // pred_check
      _
    $region10: #{downsample_forward.1} parent=5 // pred_check_branch
      %180 = sbr.rel (%p177) target = $region12
    $region11: #{downsample_forward.1} parent=5 // pred_region
      %s181 = ssub.s32 %s10, 1
      // Predicated region
      $region13: #{downsample_forward.1} parent=11 // pred_check
        %p182 = pneg %p111
      $region14: #{downsample_forward.1} parent=11 // pred_check_branch
        %184 = sbr.rel (%p182) target = $region16
      $region15: #{downsample_forward.1} parent=11 // pred_region
        %p185 = scmp.lt.s32.totalorder %s22, 0
        %s186 = scalar_select %p185, %s22, 0
        %s187 = smul.addr %s186, 4
        %s188 = scalar_lea.vmem %s2, %s187
      $region16: #{downsample_forward.1} parent=11 // pred_fallthru
        _
      // Predicated region
      $region17: #{downsample_forward.1} parent=11 // pred_check
        %p189 = pneg %p137
      $region18: #{downsample_forward.1} parent=11 // pred_check_branch
        %191 = sbr.rel (%p189) target = $region20
      $region19: #{downsample_forward.1} parent=11 // pred_region
        %p192 = scmp.lt.s32.totalorder %s22, 0
        %s193 = scalar_select %p192, %s22, 0
        %s194 = scalar_lea.vmem %s3, %s193
      $region20: #{downsample_forward.1} parent=11 // pred_fallthru
        _
    $region12: #{downsample_forward.1} parent=5 // pred_fallthru
      _
    %p195 = scmp.lt.s32.totalorder %s10, 8
    // Predicated region
    $region21: #{downsample_forward.1} parent=5 // pred_check
      %p196 = pneg %p195
    $region22: #{downsample_forward.1} parent=5 // pred_check_branch
      %198 = sbr.rel (%p196) target = $region24
    $region23: #{downsample_forward.1} parent=5 // pred_region
      // Predicated region
      $region25: #{downsample_forward.1} parent=23 // pred_check
        %p199 = pneg %p53
      $region26: #{downsample_forward.1} parent=23 // pred_check_branch
        %201 = sbr.rel (%p199) target = $region28
      $region27: #{downsample_forward.1} parent=23 // pred_region
        %s202 = sadd.s32 %s18, 2
        %s203 = smul.u32 2, %s202
        %p204 = scmp.lt.s32.totalorder %s17, 1
        %s205 = scalar_select %p204, %s17, 1
        %p206 = scmp.lt.s32.totalorder %s203, 11
        %s207 = scalar_select %p206, %s203, 11
        %s208 = smul.addr %s207, 24
        %s209 = smul.addr %s205, 288
        %s210 = sadd.s32 %s208, %s209
        %s211 = smul.addr %s210, 4
        %s212 = scalar_lea.vmem %s0, %s211
        %s213 = sadd.s32 %s18, 2
        %s214 = smul.u32 2, %s213
      $region28: #{downsample_forward.1} parent=23 // pred_fallthru
        _
      // Predicated region
      $region29: #{downsample_forward.1} parent=23 // pred_check
        %p215 = pneg %p79
      $region30: #{downsample_forward.1} parent=23 // pred_check_branch
        %217 = sbr.rel (%p215) target = $region32
      $region31: #{downsample_forward.1} parent=23 // pred_region
        %p218 = scmp.lt.s32.totalorder %s17, 1
        %s219 = scalar_select %p218, %s17, 1
        %s220 = smul.addr %s219, 288
        %s221 = sadd.s32 48, %s220
        %s222 = smul.addr %s221, 4
        %s223 = scalar_lea.vmem %s1, %s222
      $region32: #{downsample_forward.1} parent=23 // pred_fallthru
        _
    $region24: #{downsample_forward.1} parent=5 // pred_fallthru
      _
    %p224 = scmp.le.s32.totalorder 1, %s10
    %p225 = scmp.lt.s32.totalorder %s10, 9
    %p226 = pnand %p224, %p225
    %p227 = pneg %p226
    // Predicated region
    $region33: #{downsample_forward.1} parent=5 // pred_check
      _
    $region34: #{downsample_forward.1} parent=5 // pred_check_branch
      %229 = sbr.rel (%p226) target = $region36
    $region35: #{downsample_forward.1} parent=5 // pred_region
      %s230 = ssub.s32 %s10, 1
      %s231 = sadd.s32 %s21, 2
      %s232 = smul.u32 2, %s231
      %p233 = scmp.lt.s32.totalorder %s20, 1
      %s234 = scalar_select %p233, %s20, 1
      %p235 = scmp.lt.s32.totalorder %s232, 11
      %s236 = scalar_select %p235, %s232, 11
      %s237 = smul.addr %s236, 24
      %s238 = smul.addr %s234, 288
      %s239 = sadd.s32 %s237, %s238
      %s240 = smul.addr %s239, 4
      %s241 = scalar_lea.vmem %s0, %s240
      %p242 = pneg %p59
      %p243 = pneg %p56
      %p244 = scmp.lt.s32.totalorder %s20, 1
      %s245 = scalar_select %p244, %s20, 1
      %s246 = smul.addr %s245, 288
      %s247 = sadd.s32 48, %s246
      %s248 = smul.addr %s247, 4
      %s249 = scalar_lea.vmem %s1, %s248
      %p250 = pneg %p85
      %p251 = pneg %p82
      %p252 = scmp.lt.s32.totalorder %s22, 0
      %s253 = scalar_select %p252, %s22, 0
      %s254 = smul.addr %s253, 4
      %s255 = scalar_lea.vmem %s2, %s254
      %p256 = pneg %p111
      %p257 = pneg %p108
      %p258 = scmp.lt.s32.totalorder %s22, 0
      %s259 = scalar_select %p258, %s22, 0
      %s260 = scalar_lea.vmem %s3, %s259
      %p261 = pneg %p137
      %p262 = pneg %p134
      %p263 = pneg %p167
      %p264 = pneg %p164
      %p265 = scmp.lt.s32.totalorder %s20, 1
      %s266 = scalar_select %p265, %s20, 1
      %p267 = scmp.lt.s32.totalorder %s21, 3
      %s268 = scalar_select %p267, %s21, 3
      %p269 = scmp.lt.s32.totalorder %s22, 0
      %s270 = scalar_select %p269, %s22, 0
      %s271 = smul.addr %s268, 2
      %s272 = sadd.s32 %s270, %s271
      %s273 = smul.addr %s266, 8
      %s274 = sadd.s32 %s272, %s273
      %s275 = smul.addr %s274, 8
      %s276 = scalar_lea.vmem %s4, %s275
      %s277 = sadd.s32 %s21, 2
      %s278 = smul.u32 2, %s277
      %p279 = scmp.lt.s32.totalorder %s20, 1
      %s280 = scalar_select %p279, %s20, 1
      %p281 = scmp.lt.s32.totalorder %s278, 11
      %s282 = scalar_select %p281, %s278, 11
      %s283 = smul.addr %s282, 24
      %s284 = smul.addr %s280, 288
      %s285 = sadd.s32 %s283, %s284
      %s286 = smul.addr %s285, 4
      %s287 = scalar_lea.vmem %s0, %s286
      %s288 = sadd.s32 %s21, 2
      %s289 = smul.u32 2, %s288
      %p290 = scmp.lt.s32.totalorder %s20, 1
      %s291 = scalar_select %p290, %s20, 1
      %s292 = smul.addr %s291, 288
      %s293 = sadd.s32 48, %s292
      %s294 = smul.addr %s293, 4
      %s295 = scalar_lea.vmem %s1, %s294
      %p296 = scmp.lt.s32.totalorder %s22, 0
      %s297 = scalar_select %p296, %s22, 0
      %s298 = smul.addr %s297, 4
      %s299 = scalar_lea.vmem %s2, %s298
      %p300 = scmp.lt.s32.totalorder %s22, 0
      %s301 = scalar_select %p300, %s22, 0
      %s302 = scalar_lea.vmem %s3, %s301
      %p303 = scmp.lt.s32.totalorder %s20, 1
      %s304 = scalar_select %p303, %s20, 1
      %p305 = scmp.lt.s32.totalorder %s21, 3
      %s306 = scalar_select %p305, %s21, 3
      %p307 = scmp.lt.s32.totalorder %s22, 0
      %s308 = scalar_select %p307, %s22, 0
      %s309 = smul.addr %s306, 2
      %s310 = sadd.s32 %s308, %s309
      %s311 = smul.addr %s304, 8
      %s312 = sadd.s32 %s310, %s311
      %s313 = smul.addr %s312, 8
      %s314 = scalar_lea.vmem %s4, %s313
      %p316 = scmp.eq.s32.totalorder %s22, 0
      // Predicated region
      $region37: #{downsample_forward.1} parent=35 // pred_check
        %p317 = pneg %p316
      $region38: #{downsample_forward.1} parent=35 // pred_check_branch
        %319 = sbr.rel (%p317) target = $region40
      $region39: #{downsample_forward.1} parent=35 // pred_region
        %p320 = scmp.eq.s32.totalorder %s21, 0
        // Predicated region
        $region41: #{downsample_forward.1} parent=39 // pred_check
          %p321 = pneg %p320
        $region42: #{downsample_forward.1} parent=39 // pred_check_branch
          %323 = sbr.rel (%p321) target = $region44
        $region43: #{downsample_forward.1} parent=39 // pred_region
          %vm324 = vcmask 289792
          %325 = vst.msk [vmem:[#allocation2] sm:$0xf] %vm324, 0
          %326 = vst.msk [vmem:[#allocation2 + $0x4] sm:$0xf] %vm324, 0
          %v327 = vld [vmem:[%s295] sm:$0xf]
          %v328 = vld [vmem:[%s295 + $0x4] sm:$0x3]
          %v329 = vld [vmem:[%s295 + $0x8] sm:$0xf]
          %v330 = vld [vmem:[%s295 + $0xc] sm:$0x3]
          %v331 = vld [vmem:[%s295 + $0x10] sm:$0xf]
          %v332 = vld [vmem:[%s295 + $0x14] sm:$0x3]
          %v333 = vld [vmem:[%s295 + $0x18] sm:$0xf]
          %v334 = vld [vmem:[%s295 + $0x1c] sm:$0x3]
          %v335 = vld [vmem:[%s295 + $0x20] sm:$0xf]
          %v336 = vld [vmem:[%s295 + $0x24] sm:$0x3]
          %v337 = vld [vmem:[%s295 + $0x28] sm:$0xf]
          %v338 = vld [vmem:[%s295 + $0x2c] sm:$0x3]
          %v339 = vld [vmem:[%s295 + $0x30] sm:$0xf]
          %v340 = vld [vmem:[%s295 + $0x34] sm:$0x3]
          %v341 = vld [vmem:[%s295 + $0x38] sm:$0xf]
          %v342 = vld [vmem:[%s295 + $0x3c] sm:$0x3]
          %v343 = vld [vmem:[%s295 + $0x40] sm:$0xf]
          %v344 = vld [vmem:[%s295 + $0x44] sm:$0x3]
          %v345 = vld [vmem:[%s295 + $0x48] sm:$0xf]
          %v346 = vld [vmem:[%s295 + $0x4c] sm:$0x3]
          %v347 = vld [vmem:[%s295 + $0x50] sm:$0xf]
          %v348 = vld [vmem:[%s295 + $0x54] sm:$0x3]
          %v349 = vld [vmem:[%s295 + $0x58] sm:$0xf]
          %v350 = vld [vmem:[%s295 + $0x5c] sm:$0x3]
          %v351 = vld [vmem:[%s295 + $0x60] sm:$0xf]
          %v352 = vld [vmem:[%s295 + $0x64] sm:$0x3]
          %v353 = vld [vmem:[%s295 + $0x68] sm:$0xf]
          %v354 = vld [vmem:[%s295 + $0x6c] sm:$0x3]
          %v355 = vld [vmem:[%s295 + $0x70] sm:$0xf]
          %v356 = vld [vmem:[%s295 + $0x74] sm:$0x3]
          %v357 = vld [vmem:[%s295 + $0x78] sm:$0xf]
          %v358 = vld [vmem:[%s295 + $0x7c] sm:$0x3]
          %v359 = vld [vmem:[%s295 + $0x80] sm:$0xf]
          %v360 = vld [vmem:[%s295 + $0x84] sm:$0x3]
          %v361 = vld [vmem:[%s295 + $0x88] sm:$0xf]
          %v362 = vld [vmem:[%s295 + $0x8c] sm:$0x3]
          %v363 = vld [vmem:[%s295 + $0x90] sm:$0xf]
          %v364 = vld [vmem:[%s295 + $0x94] sm:$0x3]
          %v365 = vld [vmem:[%s295 + $0x98] sm:$0xf]
          %v366 = vld [vmem:[%s295 + $0x9c] sm:$0x3]
          %v367 = vld [vmem:[%s295 + $0xa0] sm:$0xf]
          %v368 = vld [vmem:[%s295 + $0xa4] sm:$0x3]
          %v369 = vld [vmem:[%s295 + $0xa8] sm:$0xf]
          %v370 = vld [vmem:[%s295 + $0xac] sm:$0x3]
          %v371 = vld [vmem:[%s295 + $0xb0] sm:$0xf]
          %v372 = vld [vmem:[%s295 + $0xb4] sm:$0x3]
          %v373 = vld [vmem:[%s295 + $0xb8] sm:$0xf]
          %v374 = vld [vmem:[%s295 + $0xbc] sm:$0x3]
          %v375 = vunpack.c.l.bf16 %v327
          %v376 = vunpack.c.l.bf16 %v328
          %v377 = vunpack.c.l.bf16 %v329
          %v378 = vunpack.c.l.bf16 %v330
          %v379 = vunpack.c.l.bf16 %v331
          %v380 = vunpack.c.l.bf16 %v332
          %v381 = vunpack.c.l.bf16 %v333
          %v382 = vunpack.c.l.bf16 %v334
          %v383 = vunpack.c.l.bf16 %v335
          %v384 = vunpack.c.l.bf16 %v336
          %v385 = vunpack.c.l.bf16 %v337
          %v386 = vunpack.c.l.bf16 %v338
          %v387 = vunpack.c.l.bf16 %v339
          %v388 = vunpack.c.l.bf16 %v340
          %v389 = vunpack.c.l.bf16 %v341
          %v390 = vunpack.c.l.bf16 %v342
          %v391 = vunpack.c.l.bf16 %v343
          %v392 = vunpack.c.l.bf16 %v344
          %v393 = vunpack.c.l.bf16 %v345
          %v394 = vunpack.c.l.bf16 %v346
          %v395 = vunpack.c.l.bf16 %v347
          %v396 = vunpack.c.l.bf16 %v348
          %v397 = vunpack.c.l.bf16 %v349
          %v398 = vunpack.c.l.bf16 %v350
          %v399 = vunpack.c.l.bf16 %v351
          %v400 = vunpack.c.l.bf16 %v352
          %v401 = vunpack.c.l.bf16 %v353
          %v402 = vunpack.c.l.bf16 %v354
          %v403 = vunpack.c.l.bf16 %v355
          %v404 = vunpack.c.l.bf16 %v356
          %v405 = vunpack.c.l.bf16 %v357
          %v406 = vunpack.c.l.bf16 %v358
          %v407 = vunpack.c.l.bf16 %v359
          %v408 = vunpack.c.l.bf16 %v360
          %v409 = vunpack.c.l.bf16 %v361
          %v410 = vunpack.c.l.bf16 %v362
          %v411 = vunpack.c.l.bf16 %v363
          %v412 = vunpack.c.l.bf16 %v364
          %v413 = vunpack.c.l.bf16 %v365
          %v414 = vunpack.c.l.bf16 %v366
          %v415 = vunpack.c.l.bf16 %v367
          %v416 = vunpack.c.l.bf16 %v368
          %v417 = vunpack.c.l.bf16 %v369
          %v418 = vunpack.c.l.bf16 %v370
          %v419 = vunpack.c.l.bf16 %v371
          %v420 = vunpack.c.l.bf16 %v372
          %v421 = vunpack.c.l.bf16 %v373
          %v422 = vunpack.c.l.bf16 %v374
          %vm423 = vcmask 31744
          %v424 = vsel %vm423, %v375, -inf
          %v425 = vsel %vm423, %v399, -inf
          %v426 = vmax.f32 %v424, %v425
          %vm427 = vcmask 27648
          %v428 = vsel %vm427, %v376, -inf
          %v429 = vsel %vm427, %v400, -inf
          %v430 = vmax.f32 %v428, %v429
          %v431 = vsel %vm423, %v377, -inf
          %v432 = vsel %vm423, %v401, -inf
          %v433 = vmax.f32 %v431, %v432
          %v434 = vsel %vm427, %v378, -inf
          %v435 = vsel %vm427, %v402, -inf
          %v436 = vmax.f32 %v434, %v435
          %v437 = vsel %vm423, %v379, -inf
          %v438 = vsel %vm423, %v403, -inf
          %v439 = vmax.f32 %v437, %v438
          %v440 = vsel %vm427, %v380, -inf
          %v441 = vsel %vm427, %v404, -inf
          %v442 = vmax.f32 %v440, %v441
          %v443 = vsel %vm423, %v381, -inf
          %v444 = vsel %vm423, %v405, -inf
          %v445 = vmax.f32 %v443, %v444
          %v446 = vsel %vm427, %v382, -inf
          %v447 = vsel %vm427, %v406, -inf
          %v448 = vmax.f32 %v446, %v447
          %v449 = vsel %vm423, %v383, -inf
          %v450 = vsel %vm423, %v407, -inf
          %v451 = vmax.f32 %v449, %v450
          %v452 = vsel %vm427, %v384, -inf
          %v453 = vsel %vm427, %v408, -inf
          %v454 = vmax.f32 %v452, %v453
          %v455 = vsel %vm423, %v385, -inf
          %v456 = vsel %vm423, %v409, -inf
          %v457 = vmax.f32 %v455, %v456
          %v458 = vsel %vm427, %v386, -inf
          %v459 = vsel %vm427, %v410, -inf
          %v460 = vmax.f32 %v458, %v459
          %v461 = vsel %vm423, %v387, -inf
          %v462 = vsel %vm423, %v411, -inf
          %v463 = vmax.f32 %v461, %v462
          %v464 = vsel %vm427, %v388, -inf
          %v465 = vsel %vm427, %v412, -inf
          %v466 = vmax.f32 %v464, %v465
          %v467 = vsel %vm423, %v389, -inf
          %v468 = vsel %vm423, %v413, -inf
          %v469 = vmax.f32 %v467, %v468
          %v470 = vsel %vm427, %v390, -inf
          %v471 = vsel %vm427, %v414, -inf
          %v472 = vmax.f32 %v470, %v471
          %v473 = vsel %vm423, %v391, -inf
          %v474 = vsel %vm423, %v415, -inf
          %v475 = vmax.f32 %v473, %v474
          %v476 = vsel %vm427, %v392, -inf
          %v477 = vsel %vm427, %v416, -inf
          %v478 = vmax.f32 %v476, %v477
          %v479 = vsel %vm423, %v393, -inf
          %v480 = vsel %vm423, %v417, -inf
          %v481 = vmax.f32 %v479, %v480
          %v482 = vsel %vm427, %v394, -inf
          %v483 = vsel %vm427, %v418, -inf
          %v484 = vmax.f32 %v482, %v483
          %v485 = vsel %vm423, %v395, -inf
          %v486 = vsel %vm423, %v419, -inf
          %v487 = vmax.f32 %v485, %v486
          %v488 = vsel %vm427, %v396, -inf
          %v489 = vsel %vm427, %v420, -inf
          %v490 = vmax.f32 %v488, %v489
          %v491 = vsel %vm423, %v397, -inf
          %v492 = vsel %vm423, %v421, -inf
          %v493 = vmax.f32 %v491, %v492
          %v494 = vsel %vm427, %v398, -inf
          %v495 = vsel %vm427, %v422, -inf
          %v496 = vmax.f32 %v494, %v495
          %v497 = vpack.c.bf16 %v426, %v426
          %v498 = vpack.c.bf16 %v430, %v430
          %v499 = vpack.c.bf16 %v433, %v433
          %v500 = vpack.c.bf16 %v436, %v436
          %v501 = vpack.c.bf16 %v439, %v439
          %v502 = vpack.c.bf16 %v442, %v442
          %v503 = vpack.c.bf16 %v445, %v445
          %v504 = vpack.c.bf16 %v448, %v448
          %v505 = vpack.c.bf16 %v451, %v451
          %v506 = vpack.c.bf16 %v454, %v454
          %v507 = vpack.c.bf16 %v457, %v457
          %v508 = vpack.c.bf16 %v460, %v460
          %v509 = vpack.c.bf16 %v463, %v463
          %v510 = vpack.c.bf16 %v466, %v466
          %v511 = vpack.c.bf16 %v469, %v469
          %v512 = vpack.c.bf16 %v472, %v472
          %v513 = vpack.c.bf16 %v475, %v475
          %v514 = vpack.c.bf16 %v478, %v478
          %v515 = vpack.c.bf16 %v481, %v481
          %v516 = vpack.c.bf16 %v484, %v484
          %v517 = vpack.c.bf16 %v487, %v487
          %v518 = vpack.c.bf16 %v490, %v490
          %v519 = vpack.c.bf16 %v493, %v493
          %v520 = vpack.c.bf16 %v496, %v496
          %v521 = vunpack.c.l.bf16 %v497
          %v522 = vunpack.c.l.bf16 %v498
          %v523 = vunpack.c.l.bf16 %v499
          %v524 = vunpack.c.l.bf16 %v500
          %v525 = vunpack.c.l.bf16 %v501
          %v526 = vunpack.c.l.bf16 %v502
          %v527 = vunpack.c.l.bf16 %v503
          %v528 = vunpack.c.l.bf16 %v504
          %v529 = vunpack.c.l.bf16 %v505
          %v530 = vunpack.c.l.bf16 %v506
          %v531 = vunpack.c.l.bf16 %v507
          %v532 = vunpack.c.l.bf16 %v508
          %v533 = vunpack.c.l.bf16 %v509
          %v534 = vunpack.c.l.bf16 %v510
          %v535 = vunpack.c.l.bf16 %v511
          %v536 = vunpack.c.l.bf16 %v512
          %v537 = vunpack.c.l.bf16 %v513
          %v538 = vunpack.c.l.bf16 %v514
          %v539 = vunpack.c.l.bf16 %v515
          %v540 = vunpack.c.l.bf16 %v516
          %v541 = vunpack.c.l.bf16 %v517
          %v542 = vunpack.c.l.bf16 %v518
          %v543 = vunpack.c.l.bf16 %v519
          %v544 = vunpack.c.l.bf16 %v520
          %v545 = vsel %vm423, %v521, -inf
          %v546 = vsel %vm423, %v523, -inf
          %v547 = vmax.f32 %v545, %v546
          %v548 = vsel %vm427, %v522, -inf
          %v549 = vsel %vm427, %v524, -inf
          %v550 = vmax.f32 %v548, %v549
          %v551 = vsel %vm423, %v525, -inf
          %v552 = vsel %vm423, %v527, -inf
          %v553 = vmax.f32 %v551, %v552
          %v554 = vsel %vm427, %v526, -inf
          %v555 = vsel %vm427, %v528, -inf
          %v556 = vmax.f32 %v554, %v555
          %v557 = vsel %vm423, %v529, -inf
          %v558 = vsel %vm423, %v531, -inf
          %v559 = vmax.f32 %v557, %v558
          %v560 = vsel %vm427, %v530, -inf
          %v561 = vsel %vm427, %v532, -inf
          %v562 = vmax.f32 %v560, %v561
          %v563 = vsel %vm423, %v533, -inf
          %v564 = vsel %vm423, %v535, -inf
          %v565 = vmax.f32 %v563, %v564
          %v566 = vsel %vm427, %v534, -inf
          %v567 = vsel %vm427, %v536, -inf
          %v568 = vmax.f32 %v566, %v567
          %v569 = vsel %vm423, %v537, -inf
          %v570 = vsel %vm423, %v539, -inf
          %v571 = vmax.f32 %v569, %v570
          %v572 = vsel %vm427, %v538, -inf
          %v573 = vsel %vm427, %v540, -inf
          %v574 = vmax.f32 %v572, %v573
          %v575 = vsel %vm423, %v541, -inf
          %v576 = vsel %vm423, %v543, -inf
          %v577 = vmax.f32 %v575, %v576
          %v578 = vsel %vm427, %v542, -inf
          %v579 = vsel %vm427, %v544, -inf
          %v580 = vmax.f32 %v578, %v579
          %v581 = vpack.c.bf16 %v547, %v547
          %v582 = vpack.c.bf16 %v550, %v550
          %v583 = vpack.c.bf16 %v553, %v553
          %v584 = vpack.c.bf16 %v556, %v556
          %v585 = vpack.c.bf16 %v559, %v559
          %v586 = vpack.c.bf16 %v562, %v562
          %v587 = vpack.c.bf16 %v565, %v565
          %v588 = vpack.c.bf16 %v568, %v568
          %v589 = vpack.c.bf16 %v571, %v571
          %v590 = vpack.c.bf16 %v574, %v574
          %v591 = vpack.c.bf16 %v577, %v577
          %v592 = vpack.c.bf16 %v580, %v580
          %v605 = vrot.slane %v581, 3
          %v606 = vrot.slane %v582, 3
          %v607 = vrot.slane %v583, 3
          %v608 = vrot.slane %v584, 3
          %v609 = vrot.slane %v585, 3
          %v610 = vrot.slane %v586, 3
          %v611 = vrot.slane %v587, 3
          %v612 = vrot.slane %v588, 3
          %v613 = vrot.slane %v589, 3
          %v614 = vrot.slane %v590, 3
          %v615 = vrot.slane %v591, 3
          %v616 = vrot.slane %v592, 3
          %vm617 = vcmask 1040384
          %v620 = vsel %vm617, %v581, %v605
          %vm621 = vcmask 1041409
          %v622 = vsel %vm621, %v581, %v605
          %v624 = vrot.slane %v622, 1
          %vm625 = vcmask 1042434
          %v626 = vsel %vm625, %v581, %v605
          %v628 = vrot.slane %v626, 2
          %vm629 = vcmask 1043459
          %v630 = vsel %vm629, %v581, %v605
          %v632 = vrot.slane %v630, 3
          %v635 = vsel %vm617, %v582, %v606
          %v636 = vsel %vm621, %v582, %v606
          %v638 = vrot.slane %v636, 1
          %v641 = vsel %vm617, %v583, %v607
          %v642 = vsel %vm621, %v583, %v607
          %v644 = vrot.slane %v642, 1
          %v645 = vsel %vm625, %v583, %v607
          %v647 = vrot.slane %v645, 2
          %v648 = vsel %vm629, %v583, %v607
          %v650 = vrot.slane %v648, 3
          %v653 = vsel %vm617, %v584, %v608
          %v654 = vsel %vm621, %v584, %v608
          %v656 = vrot.slane %v654, 1
          %v659 = vsel %vm617, %v585, %v609
          %v660 = vsel %vm621, %v585, %v609
          %v662 = vrot.slane %v660, 1
          %v663 = vsel %vm625, %v585, %v609
          %v665 = vrot.slane %v663, 2
          %v666 = vsel %vm629, %v585, %v609
          %v668 = vrot.slane %v666, 3
          %v671 = vsel %vm617, %v586, %v610
          %v672 = vsel %vm621, %v586, %v610
          %v674 = vrot.slane %v672, 1
          %v677 = vsel %vm617, %v587, %v611
          %v678 = vsel %vm621, %v587, %v611
          %v680 = vrot.slane %v678, 1
          %v681 = vsel %vm625, %v587, %v611
          %v683 = vrot.slane %v681, 2
          %v684 = vsel %vm629, %v587, %v611
          %v686 = vrot.slane %v684, 3
          %v689 = vsel %vm617, %v588, %v612
          %v690 = vsel %vm621, %v588, %v612
          %v692 = vrot.slane %v690, 1
          %v695 = vsel %vm617, %v589, %v613
          %v696 = vsel %vm621, %v589, %v613
          %v698 = vrot.slane %v696, 1
          %v699 = vsel %vm625, %v589, %v613
          %v701 = vrot.slane %v699, 2
          %v702 = vsel %vm629, %v589, %v613
          %v704 = vrot.slane %v702, 3
          %v707 = vsel %vm617, %v590, %v614
          %v708 = vsel %vm621, %v590, %v614
          %v710 = vrot.slane %v708, 1
          %v713 = vsel %vm617, %v591, %v615
          %v714 = vsel %vm621, %v591, %v615
          %v716 = vrot.slane %v714, 1
          %v717 = vsel %vm625, %v591, %v615
          %v719 = vrot.slane %v717, 2
          %v720 = vsel %vm629, %v591, %v615
          %v722 = vrot.slane %v720, 3
          %v725 = vsel %vm617, %v592, %v616
          %v726 = vsel %vm621, %v592, %v616
          %v728 = vrot.slane %v726, 1
          %v765 = vunpack.c.l.bf16 %v620
          %v766 = vunpack.c.l.bf16 %v624
          %v767 = vunpack.c.l.bf16 %v628
          %v768 = vunpack.c.l.bf16 %v632
          %v769 = vunpack.c.l.bf16 %v635
          %v770 = vunpack.c.l.bf16 %v638
          %v771 = vunpack.c.l.bf16 %v641
          %v772 = vunpack.c.l.bf16 %v644
          %v773 = vunpack.c.l.bf16 %v647
          %v774 = vunpack.c.l.bf16 %v650
          %v775 = vunpack.c.l.bf16 %v653
          %v776 = vunpack.c.l.bf16 %v656
          %v777 = vunpack.c.l.bf16 %v659
          %v778 = vunpack.c.l.bf16 %v662
          %v779 = vunpack.c.l.bf16 %v665
          %v780 = vunpack.c.l.bf16 %v668
          %v781 = vunpack.c.l.bf16 %v671
          %v782 = vunpack.c.l.bf16 %v674
          %v783 = vunpack.c.l.bf16 %v677
          %v784 = vunpack.c.l.bf16 %v680
          %v785 = vunpack.c.l.bf16 %v683
          %v786 = vunpack.c.l.bf16 %v686
          %v787 = vunpack.c.l.bf16 %v689
          %v788 = vunpack.c.l.bf16 %v692
          %v789 = vunpack.c.l.bf16 %v695
          %v790 = vunpack.c.l.bf16 %v698
          %v791 = vunpack.c.l.bf16 %v701
          %v792 = vunpack.c.l.bf16 %v704
          %v793 = vunpack.c.l.bf16 %v707
          %v794 = vunpack.c.l.bf16 %v710
          %v795 = vunpack.c.l.bf16 %v713
          %v796 = vunpack.c.l.bf16 %v716
          %v797 = vunpack.c.l.bf16 %v719
          %v798 = vunpack.c.l.bf16 %v722
          %v799 = vunpack.c.l.bf16 %v725
          %v800 = vunpack.c.l.bf16 %v728
          %vm801 = vcmask 25600
          %v802 = vsel %vm801, %v765, -inf
          %v803 = vrot.slane %v802, 4
          %v804 = vmax.f32 %v802, %v803
          %v805 = vrot.slane %v804, 2
          %v806 = vmax.f32 %v804, %v805
          %v807 = vrot.slane %v806, 1
          %v808 = vmax.f32 %v806, %v807
          %v809 = vsel %vm801, %v766, -inf
          %v810 = vrot.slane %v809, 4
          %v811 = vmax.f32 %v809, %v810
          %v812 = vrot.slane %v811, 2
          %v813 = vmax.f32 %v811, %v812
          %v814 = vrot.slane %v813, 1
          %v815 = vmax.f32 %v813, %v814
          %v816 = vsel %vm801, %v767, -inf
          %v817 = vrot.slane %v816, 4
          %v818 = vmax.f32 %v816, %v817
          %v819 = vrot.slane %v818, 2
          %v820 = vmax.f32 %v818, %v819
          %v821 = vrot.slane %v820, 1
          %v822 = vmax.f32 %v820, %v821
          %v823 = vsel %vm801, %v768, -inf
          %v824 = vrot.slane %v823, 4
          %v825 = vmax.f32 %v823, %v824
          %v826 = vrot.slane %v825, 2
          %v827 = vmax.f32 %v825, %v826
          %v828 = vrot.slane %v827, 1
          %v829 = vmax.f32 %v827, %v828
          %v830 = vsel %vm801, %v769, -inf
          %v831 = vrot.slane %v830, 4
          %v832 = vmax.f32 %v830, %v831
          %v833 = vrot.slane %v832, 2
          %v834 = vmax.f32 %v832, %v833
          %v835 = vrot.slane %v834, 1
          %v836 = vmax.f32 %v834, %v835
          %v837 = vsel %vm801, %v770, -inf
          %v838 = vrot.slane %v837, 4
          %v839 = vmax.f32 %v837, %v838
          %v840 = vrot.slane %v839, 2
          %v841 = vmax.f32 %v839, %v840
          %v842 = vrot.slane %v841, 1
          %v843 = vmax.f32 %v841, %v842
          %v844 = vsel %vm801, %v771, -inf
          %v845 = vrot.slane %v844, 4
          %v846 = vmax.f32 %v844, %v845
          %v847 = vrot.slane %v846, 2
          %v848 = vmax.f32 %v846, %v847
          %v849 = vrot.slane %v848, 1
          %v850 = vmax.f32 %v848, %v849
          %v851 = vsel %vm801, %v772, -inf
          %v852 = vrot.slane %v851, 4
          %v853 = vmax.f32 %v851, %v852
          %v854 = vrot.slane %v853, 2
          %v855 = vmax.f32 %v853, %v854
          %v856 = vrot.slane %v855, 1
          %v857 = vmax.f32 %v855, %v856
          %v858 = vsel %vm801, %v773, -inf
          %v859 = vrot.slane %v858, 4
          %v860 = vmax.f32 %v858, %v859
          %v861 = vrot.slane %v860, 2
          %v862 = vmax.f32 %v860, %v861
          %v863 = vrot.slane %v862, 1
          %v864 = vmax.f32 %v862, %v863
          %v865 = vsel %vm801, %v774, -inf
          %v866 = vrot.slane %v865, 4
          %v867 = vmax.f32 %v865, %v866
          %v868 = vrot.slane %v867, 2
          %v869 = vmax.f32 %v867, %v868
          %v870 = vrot.slane %v869, 1
          %v871 = vmax.f32 %v869, %v870
          %v872 = vsel %vm801, %v775, -inf
          %v873 = vrot.slane %v872, 4
          %v874 = vmax.f32 %v872, %v873
          %v875 = vrot.slane %v874, 2
          %v876 = vmax.f32 %v874, %v875
          %v877 = vrot.slane %v876, 1
          %v878 = vmax.f32 %v876, %v877
          %v879 = vsel %vm801, %v776, -inf
          %v880 = vrot.slane %v879, 4
          %v881 = vmax.f32 %v879, %v880
          %v882 = vrot.slane %v881, 2
          %v883 = vmax.f32 %v881, %v882
          %v884 = vrot.slane %v883, 1
          %v885 = vmax.f32 %v883, %v884
          %v886 = vsel %vm801, %v777, -inf
          %v887 = vrot.slane %v886, 4
          %v888 = vmax.f32 %v886, %v887
          %v889 = vrot.slane %v888, 2
          %v890 = vmax.f32 %v888, %v889
          %v891 = vrot.slane %v890, 1
          %v892 = vmax.f32 %v890, %v891
          %v893 = vsel %vm801, %v778, -inf
          %v894 = vrot.slane %v893, 4
          %v895 = vmax.f32 %v893, %v894
          %v896 = vrot.slane %v895, 2
          %v897 = vmax.f32 %v895, %v896
          %v898 = vrot.slane %v897, 1
          %v899 = vmax.f32 %v897, %v898
          %v900 = vsel %vm801, %v779, -inf
          %v901 = vrot.slane %v900, 4
          %v902 = vmax.f32 %v900, %v901
          %v903 = vrot.slane %v902, 2
          %v904 = vmax.f32 %v902, %v903
          %v905 = vrot.slane %v904, 1
          %v906 = vmax.f32 %v904, %v905
          %v907 = vsel %vm801, %v780, -inf
          %v908 = vrot.slane %v907, 4
          %v909 = vmax.f32 %v907, %v908
          %v910 = vrot.slane %v909, 2
          %v911 = vmax.f32 %v909, %v910
          %v912 = vrot.slane %v911, 1
          %v913 = vmax.f32 %v911, %v912
          %v914 = vsel %vm801, %v781, -inf
          %v915 = vrot.slane %v914, 4
          %v916 = vmax.f32 %v914, %v915
          %v917 = vrot.slane %v916, 2
          %v918 = vmax.f32 %v916, %v917
          %v919 = vrot.slane %v918, 1
          %v920 = vmax.f32 %v918, %v919
          %v921 = vsel %vm801, %v782, -inf
          %v922 = vrot.slane %v921, 4
          %v923 = vmax.f32 %v921, %v922
          %v924 = vrot.slane %v923, 2
          %v925 = vmax.f32 %v923, %v924
          %v926 = vrot.slane %v925, 1
          %v927 = vmax.f32 %v925, %v926
          %v928 = vsel %vm801, %v783, -inf
          %v929 = vrot.slane %v928, 4
          %v930 = vmax.f32 %v928, %v929
          %v931 = vrot.slane %v930, 2
          %v932 = vmax.f32 %v930, %v931
          %v933 = vrot.slane %v932, 1
          %v934 = vmax.f32 %v932, %v933
          %v935 = vsel %vm801, %v784, -inf
          %v936 = vrot.slane %v935, 4
          %v937 = vmax.f32 %v935, %v936
          %v938 = vrot.slane %v937, 2
          %v939 = vmax.f32 %v937, %v938
          %v940 = vrot.slane %v939, 1
          %v941 = vmax.f32 %v939, %v940
          %v942 = vsel %vm801, %v785, -inf
          %v943 = vrot.slane %v942, 4
          %v944 = vmax.f32 %v942, %v943
          %v945 = vrot.slane %v944, 2
          %v946 = vmax.f32 %v944, %v945
          %v947 = vrot.slane %v946, 1
          %v948 = vmax.f32 %v946, %v947
          %v949 = vsel %vm801, %v786, -inf
          %v950 = vrot.slane %v949, 4
          %v951 = vmax.f32 %v949, %v950
          %v952 = vrot.slane %v951, 2
          %v953 = vmax.f32 %v951, %v952
          %v954 = vrot.slane %v953, 1
          %v955 = vmax.f32 %v953, %v954
          %v956 = vsel %vm801, %v787, -inf
          %v957 = vrot.slane %v956, 4
          %v958 = vmax.f32 %v956, %v957
          %v959 = vrot.slane %v958, 2
          %v960 = vmax.f32 %v958, %v959
          %v961 = vrot.slane %v960, 1
          %v962 = vmax.f32 %v960, %v961
          %v963 = vsel %vm801, %v788, -inf
          %v964 = vrot.slane %v963, 4
          %v965 = vmax.f32 %v963, %v964
          %v966 = vrot.slane %v965, 2
          %v967 = vmax.f32 %v965, %v966
          %v968 = vrot.slane %v967, 1
          %v969 = vmax.f32 %v967, %v968
          %v970 = vsel %vm801, %v789, -inf
          %v971 = vrot.slane %v970, 4
          %v972 = vmax.f32 %v970, %v971
          %v973 = vrot.slane %v972, 2
          %v974 = vmax.f32 %v972, %v973
          %v975 = vrot.slane %v974, 1
          %v976 = vmax.f32 %v974, %v975
          %v977 = vsel %vm801, %v790, -inf
          %v978 = vrot.slane %v977, 4
          %v979 = vmax.f32 %v977, %v978
          %v980 = vrot.slane %v979, 2
          %v981 = vmax.f32 %v979, %v980
          %v982 = vrot.slane %v981, 1
          %v983 = vmax.f32 %v981, %v982
          %v984 = vsel %vm801, %v791, -inf
          %v985 = vrot.slane %v984, 4
          %v986 = vmax.f32 %v984, %v985
          %v987 = vrot.slane %v986, 2
          %v988 = vmax.f32 %v986, %v987
          %v989 = vrot.slane %v988, 1
          %v990 = vmax.f32 %v988, %v989
          %v991 = vsel %vm801, %v792, -inf
          %v992 = vrot.slane %v991, 4
          %v993 = vmax.f32 %v991, %v992
          %v994 = vrot.slane %v993, 2
          %v995 = vmax.f32 %v993, %v994
          %v996 = vrot.slane %v995, 1
          %v997 = vmax.f32 %v995, %v996
          %v998 = vsel %vm801, %v793, -inf
          %v999 = vrot.slane %v998, 4
          %v1000 = vmax.f32 %v998, %v999
          %v1001 = vrot.slane %v1000, 2
          %v1002 = vmax.f32 %v1000, %v1001
          %v1003 = vrot.slane %v1002, 1
          %v1004 = vmax.f32 %v1002, %v1003
          %v1005 = vsel %vm801, %v794, -inf
          %v1006 = vrot.slane %v1005, 4
          %v1007 = vmax.f32 %v1005, %v1006
          %v1008 = vrot.slane %v1007, 2
          %v1009 = vmax.f32 %v1007, %v1008
          %v1010 = vrot.slane %v1009, 1
          %v1011 = vmax.f32 %v1009, %v1010
          %v1012 = vsel %vm801, %v795, -inf
          %v1013 = vrot.slane %v1012, 4
          %v1014 = vmax.f32 %v1012, %v1013
          %v1015 = vrot.slane %v1014, 2
          %v1016 = vmax.f32 %v1014, %v1015
          %v1017 = vrot.slane %v1016, 1
          %v1018 = vmax.f32 %v1016, %v1017
          %v1019 = vsel %vm801, %v796, -inf
          %v1020 = vrot.slane %v1019, 4
          %v1021 = vmax.f32 %v1019, %v1020
          %v1022 = vrot.slane %v1021, 2
          %v1023 = vmax.f32 %v1021, %v1022
          %v1024 = vrot.slane %v1023, 1
          %v1025 = vmax.f32 %v1023, %v1024
          %v1026 = vsel %vm801, %v797, -inf
          %v1027 = vrot.slane %v1026, 4
          %v1028 = vmax.f32 %v1026, %v1027
          %v1029 = vrot.slane %v1028, 2
          %v1030 = vmax.f32 %v1028, %v1029
          %v1031 = vrot.slane %v1030, 1
          %v1032 = vmax.f32 %v1030, %v1031
          %v1033 = vsel %vm801, %v798, -inf
          %v1034 = vrot.slane %v1033, 4
          %v1035 = vmax.f32 %v1033, %v1034
          %v1036 = vrot.slane %v1035, 2
          %v1037 = vmax.f32 %v1035, %v1036
          %v1038 = vrot.slane %v1037, 1
          %v1039 = vmax.f32 %v1037, %v1038
          %v1040 = vsel %vm801, %v799, -inf
          %v1041 = vrot.slane %v1040, 4
          %v1042 = vmax.f32 %v1040, %v1041
          %v1043 = vrot.slane %v1042, 2
          %v1044 = vmax.f32 %v1042, %v1043
          %v1045 = vrot.slane %v1044, 1
          %v1046 = vmax.f32 %v1044, %v1045
          %v1047 = vsel %vm801, %v800, -inf
          %v1048 = vrot.slane %v1047, 4
          %v1049 = vmax.f32 %v1047, %v1048
          %v1050 = vrot.slane %v1049, 2
          %v1051 = vmax.f32 %v1049, %v1050
          %v1052 = vrot.slane %v1051, 1
          %v1053 = vmax.f32 %v1051, %v1052
          %v1054 = vpack.c.bf16 %v808, %v808
          %v1055 = vpack.c.bf16 %v815, %v815
          %v1056 = vpack.c.bf16 %v822, %v822
          %v1057 = vpack.c.bf16 %v829, %v829
          %v1058 = vpack.c.bf16 %v836, %v836
          %v1059 = vpack.c.bf16 %v843, %v843
          %v1060 = vpack.c.bf16 %v850, %v850
          %v1061 = vpack.c.bf16 %v857, %v857
          %v1062 = vpack.c.bf16 %v864, %v864
          %v1063 = vpack.c.bf16 %v871, %v871
          %v1064 = vpack.c.bf16 %v878, %v878
          %v1065 = vpack.c.bf16 %v885, %v885
          %v1066 = vpack.c.bf16 %v892, %v892
          %v1067 = vpack.c.bf16 %v899, %v899
          %v1068 = vpack.c.bf16 %v906, %v906
          %v1069 = vpack.c.bf16 %v913, %v913
          %v1070 = vpack.c.bf16 %v920, %v920
          %v1071 = vpack.c.bf16 %v927, %v927
          %v1072 = vpack.c.bf16 %v934, %v934
          %v1073 = vpack.c.bf16 %v941, %v941
          %v1074 = vpack.c.bf16 %v948, %v948
          %v1075 = vpack.c.bf16 %v955, %v955
          %v1076 = vpack.c.bf16 %v962, %v962
          %v1077 = vpack.c.bf16 %v969, %v969
          %v1078 = vpack.c.bf16 %v976, %v976
          %v1079 = vpack.c.bf16 %v983, %v983
          %v1080 = vpack.c.bf16 %v990, %v990
          %v1081 = vpack.c.bf16 %v997, %v997
          %v1082 = vpack.c.bf16 %v1004, %v1004
          %v1083 = vpack.c.bf16 %v1011, %v1011
          %v1084 = vpack.c.bf16 %v1018, %v1018
          %v1085 = vpack.c.bf16 %v1025, %v1025
          %v1086 = vpack.c.bf16 %v1032, %v1032
          %v1087 = vpack.c.bf16 %v1039, %v1039
          %v1088 = vpack.c.bf16 %v1046, %v1046
          %v1089 = vpack.c.bf16 %v1053, %v1053
          %v1106 = vperm.slane %v1054, 0
          %v1107 = vperm.slane %v1055, 0
          %v1108 = vperm.slane %v1056, 0
          %v1109 = vperm.slane %v1057, 0
          %v1110 = vperm.slane %v1060, 0
          %v1111 = vperm.slane %v1061, 0
          %v1112 = vperm.slane %v1062, 0
          %v1113 = vperm.slane %v1063, 0
          %v1114 = vperm.slane %v1066, 0
          %v1115 = vperm.slane %v1067, 0
          %v1116 = vperm.slane %v1068, 0
          %v1117 = vperm.slane %v1069, 0
          %v1118 = vperm.slane %v1072, 0
          %v1119 = vperm.slane %v1073, 0
          %v1120 = vperm.slane %v1074, 0
          %v1121 = vperm.slane %v1075, 0
          %v1122 = vunpack.c.l.b16 %v1106
          %v1123 = vunpack.c.l.b16 %v1107
          %v1124 = vunpack.c.l.b16 %v1108
          %v1125 = vunpack.c.l.b16 %v1109
          %v1126 = vunpack.c.l.b16 %v1110
          %v1127 = vunpack.c.l.b16 %v1111
          %v1128 = vunpack.c.l.b16 %v1112
          %v1129 = vunpack.c.l.b16 %v1113
          %v1130 = vunpack.c.l.b16 %v1114
          %v1131 = vunpack.c.l.b16 %v1115
          %v1132 = vunpack.c.l.b16 %v1116
          %v1133 = vunpack.c.l.b16 %v1117
          %v1134 = vunpack.c.l.b16 %v1118
          %v1135 = vunpack.c.l.b16 %v1119
          %v1136 = vunpack.c.l.b16 %v1120
          %v1137 = vunpack.c.l.b16 %v1121
          %v1138 = vsel %vm621, %v1123, %v1122
          %v1139 = vsel %vm625, %v1124, %v1138
          %v1140 = vsel %vm629, %v1125, %v1139
          %v1141 = vsel %vm621, %v1127, %v1126
          %v1142 = vsel %vm625, %v1128, %v1141
          %v1143 = vsel %vm629, %v1129, %v1142
          %v1144 = vsel %vm621, %v1131, %v1130
          %v1145 = vsel %vm625, %v1132, %v1144
          %v1146 = vsel %vm629, %v1133, %v1145
          %v1147 = vsel %vm621, %v1135, %v1134
          %v1148 = vsel %vm625, %v1136, %v1147
          %v1149 = vsel %vm629, %v1137, %v1148
          %v1150 = vpack.c.b16 %v1140, %v1140
          %v1151 = vpack.c.b16 %v1143, %v1143
          %v1152 = vpack.c.b16 %v1146, %v1146
          %v1153 = vpack.c.b16 %v1149, %v1149
          %v1158 = vperm.slane %v1058, 0
          %v1159 = vperm.slane %v1064, 0
          %v1160 = vperm.slane %v1070, 0
          %v1161 = vperm.slane %v1076, 0
          %v1162 = vunpack.c.l.b16 %v1158
          %v1163 = vunpack.c.l.b16 %v1159
          %v1164 = vunpack.c.l.b16 %v1160
          %v1165 = vunpack.c.l.b16 %v1161
          %v1166 = vsel %vm621, %v1124, %v1123
          %v1167 = vsel %vm625, %v1125, %v1166
          %v1168 = vsel %vm629, %v1162, %v1167
          %v1169 = vsel %vm621, %v1128, %v1127
          %v1170 = vsel %vm625, %v1129, %v1169
          %v1171 = vsel %vm629, %v1163, %v1170
          %v1172 = vsel %vm621, %v1132, %v1131
          %v1173 = vsel %vm625, %v1133, %v1172
          %v1174 = vsel %vm629, %v1164, %v1173
          %v1175 = vsel %vm621, %v1136, %v1135
          %v1176 = vsel %vm625, %v1137, %v1175
          %v1177 = vsel %vm629, %v1165, %v1176
          %v1178 = vpack.c.b16 %v1168, %v1168
          %v1179 = vpack.c.b16 %v1171, %v1171
          %v1180 = vpack.c.b16 %v1174, %v1174
          %v1181 = vpack.c.b16 %v1177, %v1177
          %1182 = vrot.lane.b32.xlu0 %v1178, 4
          %v1183 = vpop.permute.xlu0 %1182
          %1184 = vrot.lane.b32.xlu0 %v1179, 4
          %v1185 = vpop.permute.xlu0 %1184
          %1186 = vrot.lane.b32.xlu0 %v1180, 4
          %v1187 = vpop.permute.xlu0 %1186
          %1188 = vrot.lane.b32.xlu0 %v1181, 4
          %v1189 = vpop.permute.xlu0 %1188
          %v1194 = vperm.slane %v1059, 0
          %v1195 = vperm.slane %v1065, 0
          %v1196 = vperm.slane %v1071, 0
          %v1197 = vperm.slane %v1077, 0
          %v1198 = vunpack.c.l.b16 %v1194
          %v1199 = vunpack.c.l.b16 %v1195
          %v1200 = vunpack.c.l.b16 %v1196
          %v1201 = vunpack.c.l.b16 %v1197
          %v1202 = vsel %vm621, %v1125, %v1124
          %v1203 = vsel %vm625, %v1162, %v1202
          %v1204 = vsel %vm629, %v1198, %v1203
          %v1205 = vsel %vm621, %v1129, %v1128
          %v1206 = vsel %vm625, %v1163, %v1205
          %v1207 = vsel %vm629, %v1199, %v1206
          %v1208 = vsel %vm621, %v1133, %v1132
          %v1209 = vsel %vm625, %v1164, %v1208
          %v1210 = vsel %vm629, %v1200, %v1209
          %v1211 = vsel %vm621, %v1137, %v1136
          %v1212 = vsel %vm625, %v1165, %v1211
          %v1213 = vsel %vm629, %v1201, %v1212
          %v1214 = vpack.c.b16 %v1204, %v1204
          %v1215 = vpack.c.b16 %v1207, %v1207
          %v1216 = vpack.c.b16 %v1210, %v1210
          %v1217 = vpack.c.b16 %v1213, %v1213
          %1218 = vrot.lane.b32.xlu0 %v1214, 8
          %v1219 = vpop.permute.xlu0 %1218
          %1220 = vrot.lane.b32.xlu0 %v1215, 8
          %v1221 = vpop.permute.xlu0 %1220
          %1222 = vrot.lane.b32.xlu0 %v1216, 8
          %v1223 = vpop.permute.xlu0 %1222
          %1224 = vrot.lane.b32.xlu0 %v1217, 8
          %v1225 = vpop.permute.xlu0 %1224
          %v1230 = vperm.slane %v1078, 0
          %v1231 = vperm.slane %v1079, 0
          %v1232 = vperm.slane %v1080, 0
          %v1233 = vperm.slane %v1081, 0
          %v1234 = vunpack.c.l.b16 %v1230
          %v1235 = vunpack.c.l.b16 %v1231
          %v1236 = vunpack.c.l.b16 %v1232
          %v1237 = vunpack.c.l.b16 %v1233
          %v1238 = vsel %vm621, %v1235, %v1234
          %v1239 = vsel %vm625, %v1236, %v1238
          %v1240 = vsel %vm629, %v1237, %v1239
          %v1241 = vpack.c.b16 %v1240, %v1240
          %1242 = vrot.lane.b32.xlu0 %v1151, 12
          %v1243 = vpop.permute.xlu0 %1242
          %1244 = vrot.lane.b32.xlu0 %v1152, 12
          %v1245 = vpop.permute.xlu0 %1244
          %1246 = vrot.lane.b32.xlu0 %v1153, 12
          %v1247 = vpop.permute.xlu0 %1246
          %1248 = vrot.lane.b32.xlu0 %v1241, 12
          %v1249 = vpop.permute.xlu0 %1248
          %v1251 = vperm.slane %v1082, 0
          %v1252 = vunpack.c.l.b16 %v1251
          %v1253 = vsel %vm621, %v1236, %v1235
          %v1254 = vsel %vm625, %v1237, %v1253
          %v1255 = vsel %vm629, %v1252, %v1254
          %v1256 = vpack.c.b16 %v1255, %v1255
          %1257 = vrot.lane.b32.xlu0 %v1179, 16
          %v1258 = vpop.permute.xlu0 %1257
          %1259 = vrot.lane.b32.xlu0 %v1180, 16
          %v1260 = vpop.permute.xlu0 %1259
          %1261 = vrot.lane.b32.xlu0 %v1181, 16
          %v1262 = vpop.permute.xlu0 %1261
          %1263 = vrot.lane.b32.xlu0 %v1256, 16
          %v1264 = vpop.permute.xlu0 %1263
          %v1266 = vperm.slane %v1083, 0
          %v1267 = vunpack.c.l.b16 %v1266
          %v1268 = vsel %vm621, %v1237, %v1236
          %v1269 = vsel %vm625, %v1252, %v1268
          %v1270 = vsel %vm629, %v1267, %v1269
          %v1271 = vpack.c.b16 %v1270, %v1270
          %1272 = vrot.lane.b32.xlu0 %v1215, 20
          %v1273 = vpop.permute.xlu0 %1272
          %1274 = vrot.lane.b32.xlu0 %v1216, 20
          %v1275 = vpop.permute.xlu0 %1274
          %1276 = vrot.lane.b32.xlu0 %v1217, 20
          %v1277 = vpop.permute.xlu0 %1276
          %1278 = vrot.lane.b32.xlu0 %v1271, 20
          %v1279 = vpop.permute.xlu0 %1278
          %v1284 = vperm.slane %v1084, 0
          %v1285 = vperm.slane %v1085, 0
          %v1286 = vperm.slane %v1086, 0
          %v1287 = vperm.slane %v1087, 0
          %v1288 = vunpack.c.l.b16 %v1284
          %v1289 = vunpack.c.l.b16 %v1285
          %v1290 = vunpack.c.l.b16 %v1286
          %v1291 = vunpack.c.l.b16 %v1287
          %v1292 = vsel %vm621, %v1289, %v1288
          %v1293 = vsel %vm625, %v1290, %v1292
          %v1294 = vsel %vm629, %v1291, %v1293
          %v1295 = vpack.c.b16 %v1294, %v1294
          %1296 = vrot.lane.b32.xlu0 %v1152, 24
          %v1297 = vpop.permute.xlu0 %1296
          %1298 = vrot.lane.b32.xlu0 %v1153, 24
          %v1299 = vpop.permute.xlu0 %1298
          %1300 = vrot.lane.b32.xlu0 %v1241, 24
          %v1301 = vpop.permute.xlu0 %1300
          %1302 = vrot.lane.b32.xlu0 %v1295, 24
          %v1303 = vpop.permute.xlu0 %1302
          %v1305 = vperm.slane %v1088, 0
          %v1306 = vunpack.c.l.b16 %v1305
          %v1307 = vsel %vm621, %v1290, %v1289
          %v1308 = vsel %vm625, %v1291, %v1307
          %v1309 = vsel %vm629, %v1306, %v1308
          %v1310 = vpack.c.b16 %v1309, %v1309
          %1311 = vrot.lane.b32.xlu0 %v1180, 28
          %v1312 = vpop.permute.xlu0 %1311
          %1313 = vrot.lane.b32.xlu0 %v1181, 28
          %v1314 = vpop.permute.xlu0 %1313
          %1315 = vrot.lane.b32.xlu0 %v1256, 28
          %v1316 = vpop.permute.xlu0 %1315
          %1317 = vrot.lane.b32.xlu0 %v1310, 28
          %v1318 = vpop.permute.xlu0 %1317
          %v1320 = vperm.slane %v1089, 0
          %v1321 = vunpack.c.l.b16 %v1320
          %v1322 = vsel %vm621, %v1291, %v1290
          %v1323 = vsel %vm625, %v1306, %v1322
          %v1324 = vsel %vm629, %v1321, %v1323
          %v1325 = vpack.c.b16 %v1324, %v1324
          %1326 = vrot.lane.b32.xlu0 %v1216, 32
          %v1327 = vpop.permute.xlu0 %1326
          %1328 = vrot.lane.b32.xlu0 %v1217, 32
          %v1329 = vpop.permute.xlu0 %1328
          %1330 = vrot.lane.b32.xlu0 %v1271, 32
          %v1331 = vpop.permute.xlu0 %1330
          %1332 = vrot.lane.b32.xlu0 %v1325, 32
          %v1333 = vpop.permute.xlu0 %1332
          %v1336 = vsel %vm423, %v1150, %v1183
          %v1339 = vsel %vm423, %v1151, %v1185
          %v1342 = vsel %vm423, %v1152, %v1187
          %v1345 = vsel %vm423, %v1153, %v1189
          %vm1346 = vcmask 64512
          %v1348 = vsel %vm1346, %v1336, %v1219
          %v1350 = vsel %vm1346, %v1339, %v1221
          %v1352 = vsel %vm1346, %v1342, %v1223
          %v1354 = vsel %vm1346, %v1345, %v1225
          %vm1355 = vcmask 97280
          %v1357 = vsel %vm1355, %v1348, %v1243
          %v1359 = vsel %vm1355, %v1350, %v1245
          %v1361 = vsel %vm1355, %v1352, %v1247
          %v1363 = vsel %vm1355, %v1354, %v1249
          %vm1364 = vcmask 130048
          %v1366 = vsel %vm1364, %v1357, %v1258
          %v1368 = vsel %vm1364, %v1359, %v1260
          %v1370 = vsel %vm1364, %v1361, %v1262
          %v1372 = vsel %vm1364, %v1363, %v1264
          %vm1373 = vcmask 162816
          %v1375 = vsel %vm1373, %v1366, %v1273
          %v1377 = vsel %vm1373, %v1368, %v1275
          %v1379 = vsel %vm1373, %v1370, %v1277
          %v1381 = vsel %vm1373, %v1372, %v1279
          %vm1382 = vcmask 195584
          %v1384 = vsel %vm1382, %v1375, %v1297
          %v1386 = vsel %vm1382, %v1377, %v1299
          %v1388 = vsel %vm1382, %v1379, %v1301
          %v1390 = vsel %vm1382, %v1381, %v1303
          %vm1391 = vcmask 228352
          %v1393 = vsel %vm1391, %v1384, %v1312
          %v1395 = vsel %vm1391, %v1386, %v1314
          %v1397 = vsel %vm1391, %v1388, %v1316
          %v1399 = vsel %vm1391, %v1390, %v1318
          %vm1400 = vcmask 261120
          %v1402 = vsel %vm1400, %v1393, %v1327
          %v1404 = vsel %vm1400, %v1395, %v1329
          %v1406 = vsel %vm1400, %v1397, %v1331
          %v1408 = vsel %vm1400, %v1399, %v1333
          %1409 = vst [vmem:[#allocation1] ss:$2 sm:$0xff] %v1402
          %s1410 = scalar_lea.vmem [#allocation1], 1
          %1411 = vst [vmem:[%s1410] ss:$2 sm:$0xff] %v1404
          %s1412 = scalar_lea.vmem [#allocation1], 16
          %1413 = vst [vmem:[%s1412] ss:$2 sm:$0xff] %v1406
          %s1414 = scalar_lea.vmem [#allocation1], 17
          %1415 = vst [vmem:[%s1414] ss:$2 sm:$0xff] %v1408
          %v1416 = vld.sshfl [vmem:[#allocation1] sm:$0xff pattern:$0x75643120]
          %v1417 = vld.sshfl [vmem:[#allocation1 + $0x10] sm:$0xff pattern:$0x75643120]
          %s1420 = scalar_lea.vmem [#allocation2], 8
          %1421 = vst.msk [vmem:[%s1420] sm:$0xf] %vm324, %v1416
          %1422 = vst.msk [vmem:[%s1420 + $0x4] sm:$0xf] %vm324, %v1417
        $region44: #{downsample_forward.1} parent=39 // pred_fallthru
          _
        %v1423 = vld [vmem:[%s287] sm:$0xf]
        %v1424 = vld [vmem:[%s287 + $0x4] sm:$0x3]
        %v1425 = vld [vmem:[%s287 + $0x8] sm:$0xf]
        %v1426 = vld [vmem:[%s287 + $0xc] sm:$0x3]
        %v1427 = vld [vmem:[%s287 + $0x10] sm:$0xf]
        %v1428 = vld [vmem:[%s287 + $0x14] sm:$0x3]
        %v1429 = vld [vmem:[%s287 + $0x18] sm:$0xf]
        %v1430 = vld [vmem:[%s287 + $0x1c] sm:$0x3]
        %v1431 = vld [vmem:[%s287 + $0x20] sm:$0xf]
        %v1432 = vld [vmem:[%s287 + $0x24] sm:$0x3]
        %v1433 = vld [vmem:[%s287 + $0x28] sm:$0xf]
        %v1434 = vld [vmem:[%s287 + $0x2c] sm:$0x3]
        %v1435 = vld [vmem:[%s287 + $0x30] sm:$0xf]
        %v1436 = vld [vmem:[%s287 + $0x34] sm:$0x3]
        %v1437 = vld [vmem:[%s287 + $0x38] sm:$0xf]
        %v1438 = vld [vmem:[%s287 + $0x3c] sm:$0x3]
        %v1439 = vld [vmem:[%s287 + $0x40] sm:$0xf]
        %v1440 = vld [vmem:[%s287 + $0x44] sm:$0x3]
        %v1441 = vld [vmem:[%s287 + $0x48] sm:$0xf]
        %v1442 = vld [vmem:[%s287 + $0x4c] sm:$0x3]
        %v1443 = vld [vmem:[%s287 + $0x50] sm:$0xf]
        %v1444 = vld [vmem:[%s287 + $0x54] sm:$0x3]
        %v1445 = vld [vmem:[%s287 + $0x58] sm:$0xf]
        %v1446 = vld [vmem:[%s287 + $0x5c] sm:$0x3]
        %v1447 = vld [vmem:[%s287 + $0x60] sm:$0xf]
        %v1448 = vld [vmem:[%s287 + $0x64] sm:$0x3]
        %v1449 = vld [vmem:[%s287 + $0x68] sm:$0xf]
        %v1450 = vld [vmem:[%s287 + $0x6c] sm:$0x3]
        %v1451 = vld [vmem:[%s287 + $0x70] sm:$0xf]
        %v1452 = vld [vmem:[%s287 + $0x74] sm:$0x3]
        %v1453 = vld [vmem:[%s287 + $0x78] sm:$0xf]
        %v1454 = vld [vmem:[%s287 + $0x7c] sm:$0x3]
        %v1455 = vld [vmem:[%s287 + $0x80] sm:$0xf]
        %v1456 = vld [vmem:[%s287 + $0x84] sm:$0x3]
        %v1457 = vld [vmem:[%s287 + $0x88] sm:$0xf]
        %v1458 = vld [vmem:[%s287 + $0x8c] sm:$0x3]
        %v1459 = vld [vmem:[%s287 + $0x90] sm:$0xf]
        %v1460 = vld [vmem:[%s287 + $0x94] sm:$0x3]
        %v1461 = vld [vmem:[%s287 + $0x98] sm:$0xf]
        %v1462 = vld [vmem:[%s287 + $0x9c] sm:$0x3]
        %v1463 = vld [vmem:[%s287 + $0xa0] sm:$0xf]
        %v1464 = vld [vmem:[%s287 + $0xa4] sm:$0x3]
        %v1465 = vld [vmem:[%s287 + $0xa8] sm:$0xf]
        %v1466 = vld [vmem:[%s287 + $0xac] sm:$0x3]
        %v1467 = vld [vmem:[%s287 + $0xb0] sm:$0xf]
        %v1468 = vld [vmem:[%s287 + $0xb4] sm:$0x3]
        %v1469 = vld [vmem:[%s287 + $0xb8] sm:$0xf]
        %v1470 = vld [vmem:[%s287 + $0xbc] sm:$0x3]
        %v1471 = vunpack.c.l.bf16 %v1423
        %v1472 = vunpack.c.l.bf16 %v1424
        %v1473 = vunpack.c.l.bf16 %v1425
        %v1474 = vunpack.c.l.bf16 %v1426
        %v1475 = vunpack.c.l.bf16 %v1427
        %v1476 = vunpack.c.l.bf16 %v1428
        %v1477 = vunpack.c.l.bf16 %v1429
        %v1478 = vunpack.c.l.bf16 %v1430
        %v1479 = vunpack.c.l.bf16 %v1431
        %v1480 = vunpack.c.l.bf16 %v1432
        %v1481 = vunpack.c.l.bf16 %v1433
        %v1482 = vunpack.c.l.bf16 %v1434
        %v1483 = vunpack.c.l.bf16 %v1435
        %v1484 = vunpack.c.l.bf16 %v1436
        %v1485 = vunpack.c.l.bf16 %v1437
        %v1486 = vunpack.c.l.bf16 %v1438
        %v1487 = vunpack.c.l.bf16 %v1439
        %v1488 = vunpack.c.l.bf16 %v1440
        %v1489 = vunpack.c.l.bf16 %v1441
        %v1490 = vunpack.c.l.bf16 %v1442
        %v1491 = vunpack.c.l.bf16 %v1443
        %v1492 = vunpack.c.l.bf16 %v1444
        %v1493 = vunpack.c.l.bf16 %v1445
        %v1494 = vunpack.c.l.bf16 %v1446
        %v1495 = vunpack.c.l.bf16 %v1447
        %v1496 = vunpack.c.l.bf16 %v1448
        %v1497 = vunpack.c.l.bf16 %v1449
        %v1498 = vunpack.c.l.bf16 %v1450
        %v1499 = vunpack.c.l.bf16 %v1451
        %v1500 = vunpack.c.l.bf16 %v1452
        %v1501 = vunpack.c.l.bf16 %v1453
        %v1502 = vunpack.c.l.bf16 %v1454
        %v1503 = vunpack.c.l.bf16 %v1455
        %v1504 = vunpack.c.l.bf16 %v1456
        %v1505 = vunpack.c.l.bf16 %v1457
        %v1506 = vunpack.c.l.bf16 %v1458
        %v1507 = vunpack.c.l.bf16 %v1459
        %v1508 = vunpack.c.l.bf16 %v1460
        %v1509 = vunpack.c.l.bf16 %v1461
        %v1510 = vunpack.c.l.bf16 %v1462
        %v1511 = vunpack.c.l.bf16 %v1463
        %v1512 = vunpack.c.l.bf16 %v1464
        %v1513 = vunpack.c.l.bf16 %v1465
        %v1514 = vunpack.c.l.bf16 %v1466
        %v1515 = vunpack.c.l.bf16 %v1467
        %v1516 = vunpack.c.l.bf16 %v1468
        %v1517 = vunpack.c.l.bf16 %v1469
        %v1518 = vunpack.c.l.bf16 %v1470
        %vm1519 = vcmask 31744
        %v1520 = vsel %vm1519, %v1471, -inf
        %v1521 = vsel %vm1519, %v1495, -inf
        %v1522 = vmax.f32 %v1520, %v1521
        %vm1523 = vcmask 27648
        %v1524 = vsel %vm1523, %v1472, -inf
        %v1525 = vsel %vm1523, %v1496, -inf
        %v1526 = vmax.f32 %v1524, %v1525
        %v1527 = vsel %vm1519, %v1473, -inf
        %v1528 = vsel %vm1519, %v1497, -inf
        %v1529 = vmax.f32 %v1527, %v1528
        %v1530 = vsel %vm1523, %v1474, -inf
        %v1531 = vsel %vm1523, %v1498, -inf
        %v1532 = vmax.f32 %v1530, %v1531
        %v1533 = vsel %vm1519, %v1475, -inf
        %v1534 = vsel %vm1519, %v1499, -inf
        %v1535 = vmax.f32 %v1533, %v1534
        %v1536 = vsel %vm1523, %v1476, -inf
        %v1537 = vsel %vm1523, %v1500, -inf
        %v1538 = vmax.f32 %v1536, %v1537
        %v1539 = vsel %vm1519, %v1477, -inf
        %v1540 = vsel %vm1519, %v1501, -inf
        %v1541 = vmax.f32 %v1539, %v1540
        %v1542 = vsel %vm1523, %v1478, -inf
        %v1543 = vsel %vm1523, %v1502, -inf
        %v1544 = vmax.f32 %v1542, %v1543
        %v1545 = vsel %vm1519, %v1479, -inf
        %v1546 = vsel %vm1519, %v1503, -inf
        %v1547 = vmax.f32 %v1545, %v1546
        %v1548 = vsel %vm1523, %v1480, -inf
        %v1549 = vsel %vm1523, %v1504, -inf
        %v1550 = vmax.f32 %v1548, %v1549
        %v1551 = vsel %vm1519, %v1481, -inf
        %v1552 = vsel %vm1519, %v1505, -inf
        %v1553 = vmax.f32 %v1551, %v1552
        %v1554 = vsel %vm1523, %v1482, -inf
        %v1555 = vsel %vm1523, %v1506, -inf
        %v1556 = vmax.f32 %v1554, %v1555
        %v1557 = vsel %vm1519, %v1483, -inf
        %v1558 = vsel %vm1519, %v1507, -inf
        %v1559 = vmax.f32 %v1557, %v1558
        %v1560 = vsel %vm1523, %v1484, -inf
        %v1561 = vsel %vm1523, %v1508, -inf
        %v1562 = vmax.f32 %v1560, %v1561
        %v1563 = vsel %vm1519, %v1485, -inf
        %v1564 = vsel %vm1519, %v1509, -inf
        %v1565 = vmax.f32 %v1563, %v1564
        %v1566 = vsel %vm1523, %v1486, -inf
        %v1567 = vsel %vm1523, %v1510, -inf
        %v1568 = vmax.f32 %v1566, %v1567
        %v1569 = vsel %vm1519, %v1487, -inf
        %v1570 = vsel %vm1519, %v1511, -inf
        %v1571 = vmax.f32 %v1569, %v1570
        %v1572 = vsel %vm1523, %v1488, -inf
        %v1573 = vsel %vm1523, %v1512, -inf
        %v1574 = vmax.f32 %v1572, %v1573
        %v1575 = vsel %vm1519, %v1489, -inf
        %v1576 = vsel %vm1519, %v1513, -inf
        %v1577 = vmax.f32 %v1575, %v1576
        %v1578 = vsel %vm1523, %v1490, -inf
        %v1579 = vsel %vm1523, %v1514, -inf
        %v1580 = vmax.f32 %v1578, %v1579
        %v1581 = vsel %vm1519, %v1491, -inf
        %v1582 = vsel %vm1519, %v1515, -inf
        %v1583 = vmax.f32 %v1581, %v1582
        %v1584 = vsel %vm1523, %v1492, -inf
        %v1585 = vsel %vm1523, %v1516, -inf
        %v1586 = vmax.f32 %v1584, %v1585
        %v1587 = vsel %vm1519, %v1493, -inf
        %v1588 = vsel %vm1519, %v1517, -inf
        %v1589 = vmax.f32 %v1587, %v1588
        %v1590 = vsel %vm1523, %v1494, -inf
        %v1591 = vsel %vm1523, %v1518, -inf
        %v1592 = vmax.f32 %v1590, %v1591
        %v1593 = vpack.c.bf16 %v1522, %v1522
        %v1594 = vpack.c.bf16 %v1526, %v1526
        %v1595 = vpack.c.bf16 %v1529, %v1529
        %v1596 = vpack.c.bf16 %v1532, %v1532
        %v1597 = vpack.c.bf16 %v1535, %v1535
        %v1598 = vpack.c.bf16 %v1538, %v1538
        %v1599 = vpack.c.bf16 %v1541, %v1541
        %v1600 = vpack.c.bf16 %v1544, %v1544
        %v1601 = vpack.c.bf16 %v1547, %v1547
        %v1602 = vpack.c.bf16 %v1550, %v1550
        %v1603 = vpack.c.bf16 %v1553, %v1553
        %v1604 = vpack.c.bf16 %v1556, %v1556
        %v1605 = vpack.c.bf16 %v1559, %v1559
        %v1606 = vpack.c.bf16 %v1562, %v1562
        %v1607 = vpack.c.bf16 %v1565, %v1565
        %v1608 = vpack.c.bf16 %v1568, %v1568
        %v1609 = vpack.c.bf16 %v1571, %v1571
        %v1610 = vpack.c.bf16 %v1574, %v1574
        %v1611 = vpack.c.bf16 %v1577, %v1577
        %v1612 = vpack.c.bf16 %v1580, %v1580
        %v1613 = vpack.c.bf16 %v1583, %v1583
        %v1614 = vpack.c.bf16 %v1586, %v1586
        %v1615 = vpack.c.bf16 %v1589, %v1589
        %v1616 = vpack.c.bf16 %v1592, %v1592
        %v1617 = vunpack.c.l.bf16 %v1593
        %v1618 = vunpack.c.l.bf16 %v1594
        %v1619 = vunpack.c.l.bf16 %v1595
        %v1620 = vunpack.c.l.bf16 %v1596
        %v1621 = vunpack.c.l.bf16 %v1597
        %v1622 = vunpack.c.l.bf16 %v1598
        %v1623 = vunpack.c.l.bf16 %v1599
        %v1624 = vunpack.c.l.bf16 %v1600
        %v1625 = vunpack.c.l.bf16 %v1601
        %v1626 = vunpack.c.l.bf16 %v1602
        %v1627 = vunpack.c.l.bf16 %v1603
        %v1628 = vunpack.c.l.bf16 %v1604
        %v1629 = vunpack.c.l.bf16 %v1605
        %v1630 = vunpack.c.l.bf16 %v1606
        %v1631 = vunpack.c.l.bf16 %v1607
        %v1632 = vunpack.c.l.bf16 %v1608
        %v1633 = vunpack.c.l.bf16 %v1609
        %v1634 = vunpack.c.l.bf16 %v1610
        %v1635 = vunpack.c.l.bf16 %v1611
        %v1636 = vunpack.c.l.bf16 %v1612
        %v1637 = vunpack.c.l.bf16 %v1613
        %v1638 = vunpack.c.l.bf16 %v1614
        %v1639 = vunpack.c.l.bf16 %v1615
        %v1640 = vunpack.c.l.bf16 %v1616
        %v1641 = vsel %vm1519, %v1617, -inf
        %v1642 = vsel %vm1519, %v1619, -inf
        %v1643 = vmax.f32 %v1641, %v1642
        %v1644 = vsel %vm1523, %v1618, -inf
        %v1645 = vsel %vm1523, %v1620, -inf
        %v1646 = vmax.f32 %v1644, %v1645
        %v1647 = vsel %vm1519, %v1621, -inf
        %v1648 = vsel %vm1519, %v1623, -inf
        %v1649 = vmax.f32 %v1647, %v1648
        %v1650 = vsel %vm1523, %v1622, -inf
        %v1651 = vsel %vm1523, %v1624, -inf
        %v1652 = vmax.f32 %v1650, %v1651
        %v1653 = vsel %vm1519, %v1625, -inf
        %v1654 = vsel %vm1519, %v1627, -inf
        %v1655 = vmax.f32 %v1653, %v1654
        %v1656 = vsel %vm1523, %v1626, -inf
        %v1657 = vsel %vm1523, %v1628, -inf
        %v1658 = vmax.f32 %v1656, %v1657
        %v1659 = vsel %vm1519, %v1629, -inf
        %v1660 = vsel %vm1519, %v1631, -inf
        %v1661 = vmax.f32 %v1659, %v1660
        %v1662 = vsel %vm1523, %v1630, -inf
        %v1663 = vsel %vm1523, %v1632, -inf
        %v1664 = vmax.f32 %v1662, %v1663
        %v1665 = vsel %vm1519, %v1633, -inf
        %v1666 = vsel %vm1519, %v1635, -inf
        %v1667 = vmax.f32 %v1665, %v1666
        %v1668 = vsel %vm1523, %v1634, -inf
        %v1669 = vsel %vm1523, %v1636, -inf
        %v1670 = vmax.f32 %v1668, %v1669
        %v1671 = vsel %vm1519, %v1637, -inf
        %v1672 = vsel %vm1519, %v1639, -inf
        %v1673 = vmax.f32 %v1671, %v1672
        %v1674 = vsel %vm1523, %v1638, -inf
        %v1675 = vsel %vm1523, %v1640, -inf
        %v1676 = vmax.f32 %v1674, %v1675
        %v1677 = vpack.c.bf16 %v1643, %v1643
        %v1678 = vpack.c.bf16 %v1646, %v1646
        %v1679 = vpack.c.bf16 %v1649, %v1649
        %v1680 = vpack.c.bf16 %v1652, %v1652
        %v1681 = vpack.c.bf16 %v1655, %v1655
        %v1682 = vpack.c.bf16 %v1658, %v1658
        %v1683 = vpack.c.bf16 %v1661, %v1661
        %v1684 = vpack.c.bf16 %v1664, %v1664
        %v1685 = vpack.c.bf16 %v1667, %v1667
        %v1686 = vpack.c.bf16 %v1670, %v1670
        %v1687 = vpack.c.bf16 %v1673, %v1673
        %v1688 = vpack.c.bf16 %v1676, %v1676
        %v1701 = vrot.slane %v1677, 3
        %v1702 = vrot.slane %v1678, 3
        %v1703 = vrot.slane %v1679, 3
        %v1704 = vrot.slane %v1680, 3
        %v1705 = vrot.slane %v1681, 3
        %v1706 = vrot.slane %v1682, 3
        %v1707 = vrot.slane %v1683, 3
        %v1708 = vrot.slane %v1684, 3
        %v1709 = vrot.slane %v1685, 3
        %v1710 = vrot.slane %v1686, 3
        %v1711 = vrot.slane %v1687, 3
        %v1712 = vrot.slane %v1688, 3
        %vm1713 = vcmask 1040384
        %v1716 = vsel %vm1713, %v1677, %v1701
        %vm1717 = vcmask 1041409
        %v1718 = vsel %vm1717, %v1677, %v1701
        %v1720 = vrot.slane %v1718, 1
        %vm1721 = vcmask 1042434
        %v1722 = vsel %vm1721, %v1677, %v1701
        %v1724 = vrot.slane %v1722, 2
        %vm1725 = vcmask 1043459
        %v1726 = vsel %vm1725, %v1677, %v1701
        %v1728 = vrot.slane %v1726, 3
        %v1731 = vsel %vm1713, %v1678, %v1702
        %v1732 = vsel %vm1717, %v1678, %v1702
        %v1734 = vrot.slane %v1732, 1
        %v1737 = vsel %vm1713, %v1679, %v1703
        %v1738 = vsel %vm1717, %v1679, %v1703
        %v1740 = vrot.slane %v1738, 1
        %v1741 = vsel %vm1721, %v1679, %v1703
        %v1743 = vrot.slane %v1741, 2
        %v1744 = vsel %vm1725, %v1679, %v1703
        %v1746 = vrot.slane %v1744, 3
        %v1749 = vsel %vm1713, %v1680, %v1704
        %v1750 = vsel %vm1717, %v1680, %v1704
        %v1752 = vrot.slane %v1750, 1
        %v1755 = vsel %vm1713, %v1681, %v1705
        %v1756 = vsel %vm1717, %v1681, %v1705
        %v1758 = vrot.slane %v1756, 1
        %v1759 = vsel %vm1721, %v1681, %v1705
        %v1761 = vrot.slane %v1759, 2
        %v1762 = vsel %vm1725, %v1681, %v1705
        %v1764 = vrot.slane %v1762, 3
        %v1767 = vsel %vm1713, %v1682, %v1706
        %v1768 = vsel %vm1717, %v1682, %v1706
        %v1770 = vrot.slane %v1768, 1
        %v1773 = vsel %vm1713, %v1683, %v1707
        %v1774 = vsel %vm1717, %v1683, %v1707
        %v1776 = vrot.slane %v1774, 1
        %v1777 = vsel %vm1721, %v1683, %v1707
        %v1779 = vrot.slane %v1777, 2
        %v1780 = vsel %vm1725, %v1683, %v1707
        %v1782 = vrot.slane %v1780, 3
        %v1785 = vsel %vm1713, %v1684, %v1708
        %v1786 = vsel %vm1717, %v1684, %v1708
        %v1788 = vrot.slane %v1786, 1
        %v1791 = vsel %vm1713, %v1685, %v1709
        %v1792 = vsel %vm1717, %v1685, %v1709
        %v1794 = vrot.slane %v1792, 1
        %v1795 = vsel %vm1721, %v1685, %v1709
        %v1797 = vrot.slane %v1795, 2
        %v1798 = vsel %vm1725, %v1685, %v1709
        %v1800 = vrot.slane %v1798, 3
        %v1803 = vsel %vm1713, %v1686, %v1710
        %v1804 = vsel %vm1717, %v1686, %v1710
        %v1806 = vrot.slane %v1804, 1
        %v1809 = vsel %vm1713, %v1687, %v1711
        %v1810 = vsel %vm1717, %v1687, %v1711
        %v1812 = vrot.slane %v1810, 1
        %v1813 = vsel %vm1721, %v1687, %v1711
        %v1815 = vrot.slane %v1813, 2
        %v1816 = vsel %vm1725, %v1687, %v1711
        %v1818 = vrot.slane %v1816, 3
        %v1821 = vsel %vm1713, %v1688, %v1712
        %v1822 = vsel %vm1717, %v1688, %v1712
        %v1824 = vrot.slane %v1822, 1
        %v1861 = vunpack.c.l.bf16 %v1716
        %v1862 = vunpack.c.l.bf16 %v1720
        %v1863 = vunpack.c.l.bf16 %v1724
        %v1864 = vunpack.c.l.bf16 %v1728
        %v1865 = vunpack.c.l.bf16 %v1731
        %v1866 = vunpack.c.l.bf16 %v1734
        %v1867 = vunpack.c.l.bf16 %v1737
        %v1868 = vunpack.c.l.bf16 %v1740
        %v1869 = vunpack.c.l.bf16 %v1743
        %v1870 = vunpack.c.l.bf16 %v1746
        %v1871 = vunpack.c.l.bf16 %v1749
        %v1872 = vunpack.c.l.bf16 %v1752
        %v1873 = vunpack.c.l.bf16 %v1755
        %v1874 = vunpack.c.l.bf16 %v1758
        %v1875 = vunpack.c.l.bf16 %v1761
        %v1876 = vunpack.c.l.bf16 %v1764
        %v1877 = vunpack.c.l.bf16 %v1767
        %v1878 = vunpack.c.l.bf16 %v1770
        %v1879 = vunpack.c.l.bf16 %v1773
        %v1880 = vunpack.c.l.bf16 %v1776
        %v1881 = vunpack.c.l.bf16 %v1779
        %v1882 = vunpack.c.l.bf16 %v1782
        %v1883 = vunpack.c.l.bf16 %v1785
        %v1884 = vunpack.c.l.bf16 %v1788
        %v1885 = vunpack.c.l.bf16 %v1791
        %v1886 = vunpack.c.l.bf16 %v1794
        %v1887 = vunpack.c.l.bf16 %v1797
        %v1888 = vunpack.c.l.bf16 %v1800
        %v1889 = vunpack.c.l.bf16 %v1803
        %v1890 = vunpack.c.l.bf16 %v1806
        %v1891 = vunpack.c.l.bf16 %v1809
        %v1892 = vunpack.c.l.bf16 %v1812
        %v1893 = vunpack.c.l.bf16 %v1815
        %v1894 = vunpack.c.l.bf16 %v1818
        %v1895 = vunpack.c.l.bf16 %v1821
        %v1896 = vunpack.c.l.bf16 %v1824
        %vm1897 = vcmask 25600
        %v1898 = vsel %vm1897, %v1861, -inf
        %v1899 = vrot.slane %v1898, 4
        %v1900 = vmax.f32 %v1898, %v1899
        %v1901 = vrot.slane %v1900, 2
        %v1902 = vmax.f32 %v1900, %v1901
        %v1903 = vrot.slane %v1902, 1
        %v1904 = vmax.f32 %v1902, %v1903
        %v1905 = vsel %vm1897, %v1862, -inf
        %v1906 = vrot.slane %v1905, 4
        %v1907 = vmax.f32 %v1905, %v1906
        %v1908 = vrot.slane %v1907, 2
        %v1909 = vmax.f32 %v1907, %v1908
        %v1910 = vrot.slane %v1909, 1
        %v1911 = vmax.f32 %v1909, %v1910
        %v1912 = vsel %vm1897, %v1863, -inf
        %v1913 = vrot.slane %v1912, 4
        %v1914 = vmax.f32 %v1912, %v1913
        %v1915 = vrot.slane %v1914, 2
        %v1916 = vmax.f32 %v1914, %v1915
        %v1917 = vrot.slane %v1916, 1
        %v1918 = vmax.f32 %v1916, %v1917
        %v1919 = vsel %vm1897, %v1864, -inf
        %v1920 = vrot.slane %v1919, 4
        %v1921 = vmax.f32 %v1919, %v1920
        %v1922 = vrot.slane %v1921, 2
        %v1923 = vmax.f32 %v1921, %v1922
        %v1924 = vrot.slane %v1923, 1
        %v1925 = vmax.f32 %v1923, %v1924
        %v1926 = vsel %vm1897, %v1865, -inf
        %v1927 = vrot.slane %v1926, 4
        %v1928 = vmax.f32 %v1926, %v1927
        %v1929 = vrot.slane %v1928, 2
        %v1930 = vmax.f32 %v1928, %v1929
        %v1931 = vrot.slane %v1930, 1
        %v1932 = vmax.f32 %v1930, %v1931
        %v1933 = vsel %vm1897, %v1866, -inf
        %v1934 = vrot.slane %v1933, 4
        %v1935 = vmax.f32 %v1933, %v1934
        %v1936 = vrot.slane %v1935, 2
        %v1937 = vmax.f32 %v1935, %v1936
        %v1938 = vrot.slane %v1937, 1
        %v1939 = vmax.f32 %v1937, %v1938
        %v1940 = vsel %vm1897, %v1867, -inf
        %v1941 = vrot.slane %v1940, 4
        %v1942 = vmax.f32 %v1940, %v1941
        %v1943 = vrot.slane %v1942, 2
        %v1944 = vmax.f32 %v1942, %v1943
        %v1945 = vrot.slane %v1944, 1
        %v1946 = vmax.f32 %v1944, %v1945
        %v1947 = vsel %vm1897, %v1868, -inf
        %v1948 = vrot.slane %v1947, 4
        %v1949 = vmax.f32 %v1947, %v1948
        %v1950 = vrot.slane %v1949, 2
        %v1951 = vmax.f32 %v1949, %v1950
        %v1952 = vrot.slane %v1951, 1
        %v1953 = vmax.f32 %v1951, %v1952
        %v1954 = vsel %vm1897, %v1869, -inf
        %v1955 = vrot.slane %v1954, 4
        %v1956 = vmax.f32 %v1954, %v1955
        %v1957 = vrot.slane %v1956, 2
        %v1958 = vmax.f32 %v1956, %v1957
        %v1959 = vrot.slane %v1958, 1
        %v1960 = vmax.f32 %v1958, %v1959
        %v1961 = vsel %vm1897, %v1870, -inf
        %v1962 = vrot.slane %v1961, 4
        %v1963 = vmax.f32 %v1961, %v1962
        %v1964 = vrot.slane %v1963, 2
        %v1965 = vmax.f32 %v1963, %v1964
        %v1966 = vrot.slane %v1965, 1
        %v1967 = vmax.f32 %v1965, %v1966
        %v1968 = vsel %vm1897, %v1871, -inf
        %v1969 = vrot.slane %v1968, 4
        %v1970 = vmax.f32 %v1968, %v1969
        %v1971 = vrot.slane %v1970, 2
        %v1972 = vmax.f32 %v1970, %v1971
        %v1973 = vrot.slane %v1972, 1
        %v1974 = vmax.f32 %v1972, %v1973
        %v1975 = vsel %vm1897, %v1872, -inf
        %v1976 = vrot.slane %v1975, 4
        %v1977 = vmax.f32 %v1975, %v1976
        %v1978 = vrot.slane %v1977, 2
        %v1979 = vmax.f32 %v1977, %v1978
        %v1980 = vrot.slane %v1979, 1
        %v1981 = vmax.f32 %v1979, %v1980
        %v1982 = vsel %vm1897, %v1873, -inf
        %v1983 = vrot.slane %v1982, 4
        %v1984 = vmax.f32 %v1982, %v1983
        %v1985 = vrot.slane %v1984, 2
        %v1986 = vmax.f32 %v1984, %v1985
        %v1987 = vrot.slane %v1986, 1
        %v1988 = vmax.f32 %v1986, %v1987
        %v1989 = vsel %vm1897, %v1874, -inf
        %v1990 = vrot.slane %v1989, 4
        %v1991 = vmax.f32 %v1989, %v1990
        %v1992 = vrot.slane %v1991, 2
        %v1993 = vmax.f32 %v1991, %v1992
        %v1994 = vrot.slane %v1993, 1
        %v1995 = vmax.f32 %v1993, %v1994
        %v1996 = vsel %vm1897, %v1875, -inf
        %v1997 = vrot.slane %v1996, 4
        %v1998 = vmax.f32 %v1996, %v1997
        %v1999 = vrot.slane %v1998, 2
        %v2000 = vmax.f32 %v1998, %v1999
        %v2001 = vrot.slane %v2000, 1
        %v2002 = vmax.f32 %v2000, %v2001
        %v2003 = vsel %vm1897, %v1876, -inf
        %v2004 = vrot.slane %v2003, 4
        %v2005 = vmax.f32 %v2003, %v2004
        %v2006 = vrot.slane %v2005, 2
        %v2007 = vmax.f32 %v2005, %v2006
        %v2008 = vrot.slane %v2007, 1
        %v2009 = vmax.f32 %v2007, %v2008
        %v2010 = vsel %vm1897, %v1877, -inf
        %v2011 = vrot.slane %v2010, 4
        %v2012 = vmax.f32 %v2010, %v2011
        %v2013 = vrot.slane %v2012, 2
        %v2014 = vmax.f32 %v2012, %v2013
        %v2015 = vrot.slane %v2014, 1
        %v2016 = vmax.f32 %v2014, %v2015
        %v2017 = vsel %vm1897, %v1878, -inf
        %v2018 = vrot.slane %v2017, 4
        %v2019 = vmax.f32 %v2017, %v2018
        %v2020 = vrot.slane %v2019, 2
        %v2021 = vmax.f32 %v2019, %v2020
        %v2022 = vrot.slane %v2021, 1
        %v2023 = vmax.f32 %v2021, %v2022
        %v2024 = vsel %vm1897, %v1879, -inf
        %v2025 = vrot.slane %v2024, 4
        %v2026 = vmax.f32 %v2024, %v2025
        %v2027 = vrot.slane %v2026, 2
        %v2028 = vmax.f32 %v2026, %v2027
        %v2029 = vrot.slane %v2028, 1
        %v2030 = vmax.f32 %v2028, %v2029
        %v2031 = vsel %vm1897, %v1880, -inf
        %v2032 = vrot.slane %v2031, 4
        %v2033 = vmax.f32 %v2031, %v2032
        %v2034 = vrot.slane %v2033, 2
        %v2035 = vmax.f32 %v2033, %v2034
        %v2036 = vrot.slane %v2035, 1
        %v2037 = vmax.f32 %v2035, %v2036
        %v2038 = vsel %vm1897, %v1881, -inf
        %v2039 = vrot.slane %v2038, 4
        %v2040 = vmax.f32 %v2038, %v2039
        %v2041 = vrot.slane %v2040, 2
        %v2042 = vmax.f32 %v2040, %v2041
        %v2043 = vrot.slane %v2042, 1
        %v2044 = vmax.f32 %v2042, %v2043
        %v2045 = vsel %vm1897, %v1882, -inf
        %v2046 = vrot.slane %v2045, 4
        %v2047 = vmax.f32 %v2045, %v2046
        %v2048 = vrot.slane %v2047, 2
        %v2049 = vmax.f32 %v2047, %v2048
        %v2050 = vrot.slane %v2049, 1
        %v2051 = vmax.f32 %v2049, %v2050
        %v2052 = vsel %vm1897, %v1883, -inf
        %v2053 = vrot.slane %v2052, 4
        %v2054 = vmax.f32 %v2052, %v2053
        %v2055 = vrot.slane %v2054, 2
        %v2056 = vmax.f32 %v2054, %v2055
        %v2057 = vrot.slane %v2056, 1
        %v2058 = vmax.f32 %v2056, %v2057
        %v2059 = vsel %vm1897, %v1884, -inf
        %v2060 = vrot.slane %v2059, 4
        %v2061 = vmax.f32 %v2059, %v2060
        %v2062 = vrot.slane %v2061, 2
        %v2063 = vmax.f32 %v2061, %v2062
        %v2064 = vrot.slane %v2063, 1
        %v2065 = vmax.f32 %v2063, %v2064
        %v2066 = vsel %vm1897, %v1885, -inf
        %v2067 = vrot.slane %v2066, 4
        %v2068 = vmax.f32 %v2066, %v2067
        %v2069 = vrot.slane %v2068, 2
        %v2070 = vmax.f32 %v2068, %v2069
        %v2071 = vrot.slane %v2070, 1
        %v2072 = vmax.f32 %v2070, %v2071
        %v2073 = vsel %vm1897, %v1886, -inf
        %v2074 = vrot.slane %v2073, 4
        %v2075 = vmax.f32 %v2073, %v2074
        %v2076 = vrot.slane %v2075, 2
        %v2077 = vmax.f32 %v2075, %v2076
        %v2078 = vrot.slane %v2077, 1
        %v2079 = vmax.f32 %v2077, %v2078
        %v2080 = vsel %vm1897, %v1887, -inf
        %v2081 = vrot.slane %v2080, 4
        %v2082 = vmax.f32 %v2080, %v2081
        %v2083 = vrot.slane %v2082, 2
        %v2084 = vmax.f32 %v2082, %v2083
        %v2085 = vrot.slane %v2084, 1
        %v2086 = vmax.f32 %v2084, %v2085
        %v2087 = vsel %vm1897, %v1888, -inf
        %v2088 = vrot.slane %v2087, 4
        %v2089 = vmax.f32 %v2087, %v2088
        %v2090 = vrot.slane %v2089, 2
        %v2091 = vmax.f32 %v2089, %v2090
        %v2092 = vrot.slane %v2091, 1
        %v2093 = vmax.f32 %v2091, %v2092
        %v2094 = vsel %vm1897, %v1889, -inf
        %v2095 = vrot.slane %v2094, 4
        %v2096 = vmax.f32 %v2094, %v2095
        %v2097 = vrot.slane %v2096, 2
        %v2098 = vmax.f32 %v2096, %v2097
        %v2099 = vrot.slane %v2098, 1
        %v2100 = vmax.f32 %v2098, %v2099
        %v2101 = vsel %vm1897, %v1890, -inf
        %v2102 = vrot.slane %v2101, 4
        %v2103 = vmax.f32 %v2101, %v2102
        %v2104 = vrot.slane %v2103, 2
        %v2105 = vmax.f32 %v2103, %v2104
        %v2106 = vrot.slane %v2105, 1
        %v2107 = vmax.f32 %v2105, %v2106
        %v2108 = vsel %vm1897, %v1891, -inf
        %v2109 = vrot.slane %v2108, 4
        %v2110 = vmax.f32 %v2108, %v2109
        %v2111 = vrot.slane %v2110, 2
        %v2112 = vmax.f32 %v2110, %v2111
        %v2113 = vrot.slane %v2112, 1
        %v2114 = vmax.f32 %v2112, %v2113
        %v2115 = vsel %vm1897, %v1892, -inf
        %v2116 = vrot.slane %v2115, 4
        %v2117 = vmax.f32 %v2115, %v2116
        %v2118 = vrot.slane %v2117, 2
        %v2119 = vmax.f32 %v2117, %v2118
        %v2120 = vrot.slane %v2119, 1
        %v2121 = vmax.f32 %v2119, %v2120
        %v2122 = vsel %vm1897, %v1893, -inf
        %v2123 = vrot.slane %v2122, 4
        %v2124 = vmax.f32 %v2122, %v2123
        %v2125 = vrot.slane %v2124, 2
        %v2126 = vmax.f32 %v2124, %v2125
        %v2127 = vrot.slane %v2126, 1
        %v2128 = vmax.f32 %v2126, %v2127
        %v2129 = vsel %vm1897, %v1894, -inf
        %v2130 = vrot.slane %v2129, 4
        %v2131 = vmax.f32 %v2129, %v2130
        %v2132 = vrot.slane %v2131, 2
        %v2133 = vmax.f32 %v2131, %v2132
        %v2134 = vrot.slane %v2133, 1
        %v2135 = vmax.f32 %v2133, %v2134
        %v2136 = vsel %vm1897, %v1895, -inf
        %v2137 = vrot.slane %v2136, 4
        %v2138 = vmax.f32 %v2136, %v2137
        %v2139 = vrot.slane %v2138, 2
        %v2140 = vmax.f32 %v2138, %v2139
        %v2141 = vrot.slane %v2140, 1
        %v2142 = vmax.f32 %v2140, %v2141
        %v2143 = vsel %vm1897, %v1896, -inf
        %v2144 = vrot.slane %v2143, 4
        %v2145 = vmax.f32 %v2143, %v2144
        %v2146 = vrot.slane %v2145, 2
        %v2147 = vmax.f32 %v2145, %v2146
        %v2148 = vrot.slane %v2147, 1
        %v2149 = vmax.f32 %v2147, %v2148
        %v2150 = vpack.c.bf16 %v1904, %v1904
        %v2151 = vpack.c.bf16 %v1911, %v1911
        %v2152 = vpack.c.bf16 %v1918, %v1918
        %v2153 = vpack.c.bf16 %v1925, %v1925
        %v2154 = vpack.c.bf16 %v1932, %v1932
        %v2155 = vpack.c.bf16 %v1939, %v1939
        %v2156 = vpack.c.bf16 %v1946, %v1946
        %v2157 = vpack.c.bf16 %v1953, %v1953
        %v2158 = vpack.c.bf16 %v1960, %v1960
        %v2159 = vpack.c.bf16 %v1967, %v1967
        %v2160 = vpack.c.bf16 %v1974, %v1974
        %v2161 = vpack.c.bf16 %v1981, %v1981
        %v2162 = vpack.c.bf16 %v1988, %v1988
        %v2163 = vpack.c.bf16 %v1995, %v1995
        %v2164 = vpack.c.bf16 %v2002, %v2002
        %v2165 = vpack.c.bf16 %v2009, %v2009
        %v2166 = vpack.c.bf16 %v2016, %v2016
        %v2167 = vpack.c.bf16 %v2023, %v2023
        %v2168 = vpack.c.bf16 %v2030, %v2030
        %v2169 = vpack.c.bf16 %v2037, %v2037
        %v2170 = vpack.c.bf16 %v2044, %v2044
        %v2171 = vpack.c.bf16 %v2051, %v2051
        %v2172 = vpack.c.bf16 %v2058, %v2058
        %v2173 = vpack.c.bf16 %v2065, %v2065
        %v2174 = vpack.c.bf16 %v2072, %v2072
        %v2175 = vpack.c.bf16 %v2079, %v2079
        %v2176 = vpack.c.bf16 %v2086, %v2086
        %v2177 = vpack.c.bf16 %v2093, %v2093
        %v2178 = vpack.c.bf16 %v2100, %v2100
        %v2179 = vpack.c.bf16 %v2107, %v2107
        %v2180 = vpack.c.bf16 %v2114, %v2114
        %v2181 = vpack.c.bf16 %v2121, %v2121
        %v2182 = vpack.c.bf16 %v2128, %v2128
        %v2183 = vpack.c.bf16 %v2135, %v2135
        %v2184 = vpack.c.bf16 %v2142, %v2142
        %v2185 = vpack.c.bf16 %v2149, %v2149
        %v2202 = vperm.slane %v2150, 0
        %v2203 = vperm.slane %v2151, 0
        %v2204 = vperm.slane %v2152, 0
        %v2205 = vperm.slane %v2153, 0
        %v2206 = vperm.slane %v2156, 0
        %v2207 = vperm.slane %v2157, 0
        %v2208 = vperm.slane %v2158, 0
        %v2209 = vperm.slane %v2159, 0
        %v2210 = vperm.slane %v2162, 0
        %v2211 = vperm.slane %v2163, 0
        %v2212 = vperm.slane %v2164, 0
        %v2213 = vperm.slane %v2165, 0
        %v2214 = vperm.slane %v2168, 0
        %v2215 = vperm.slane %v2169, 0
        %v2216 = vperm.slane %v2170, 0
        %v2217 = vperm.slane %v2171, 0
        %v2218 = vunpack.c.l.b16 %v2202
        %v2219 = vunpack.c.l.b16 %v2203
        %v2220 = vunpack.c.l.b16 %v2204
        %v2221 = vunpack.c.l.b16 %v2205
        %v2222 = vunpack.c.l.b16 %v2206
        %v2223 = vunpack.c.l.b16 %v2207
        %v2224 = vunpack.c.l.b16 %v2208
        %v2225 = vunpack.c.l.b16 %v2209
        %v2226 = vunpack.c.l.b16 %v2210
        %v2227 = vunpack.c.l.b16 %v2211
        %v2228 = vunpack.c.l.b16 %v2212
        %v2229 = vunpack.c.l.b16 %v2213
        %v2230 = vunpack.c.l.b16 %v2214
        %v2231 = vunpack.c.l.b16 %v2215
        %v2232 = vunpack.c.l.b16 %v2216
        %v2233 = vunpack.c.l.b16 %v2217
        %v2234 = vsel %vm1717, %v2219, %v2218
        %v2235 = vsel %vm1721, %v2220, %v2234
        %v2236 = vsel %vm1725, %v2221, %v2235
        %v2237 = vsel %vm1717, %v2223, %v2222
        %v2238 = vsel %vm1721, %v2224, %v2237
        %v2239 = vsel %vm1725, %v2225, %v2238
        %v2240 = vsel %vm1717, %v2227, %v2226
        %v2241 = vsel %vm1721, %v2228, %v2240
        %v2242 = vsel %vm1725, %v2229, %v2241
        %v2243 = vsel %vm1717, %v2231, %v2230
        %v2244 = vsel %vm1721, %v2232, %v2243
        %v2245 = vsel %vm1725, %v2233, %v2244
        %v2246 = vpack.c.b16 %v2236, %v2236
        %v2247 = vpack.c.b16 %v2239, %v2239
        %v2248 = vpack.c.b16 %v2242, %v2242
        %v2249 = vpack.c.b16 %v2245, %v2245
        %v2254 = vperm.slane %v2154, 0
        %v2255 = vperm.slane %v2160, 0
        %v2256 = vperm.slane %v2166, 0
        %v2257 = vperm.slane %v2172, 0
        %v2258 = vunpack.c.l.b16 %v2254
        %v2259 = vunpack.c.l.b16 %v2255
        %v2260 = vunpack.c.l.b16 %v2256
        %v2261 = vunpack.c.l.b16 %v2257
        %v2262 = vsel %vm1717, %v2220, %v2219
        %v2263 = vsel %vm1721, %v2221, %v2262
        %v2264 = vsel %vm1725, %v2258, %v2263
        %v2265 = vsel %vm1717, %v2224, %v2223
        %v2266 = vsel %vm1721, %v2225, %v2265
        %v2267 = vsel %vm1725, %v2259, %v2266
        %v2268 = vsel %vm1717, %v2228, %v2227
        %v2269 = vsel %vm1721, %v2229, %v2268
        %v2270 = vsel %vm1725, %v2260, %v2269
        %v2271 = vsel %vm1717, %v2232, %v2231
        %v2272 = vsel %vm1721, %v2233, %v2271
        %v2273 = vsel %vm1725, %v2261, %v2272
        %v2274 = vpack.c.b16 %v2264, %v2264
        %v2275 = vpack.c.b16 %v2267, %v2267
        %v2276 = vpack.c.b16 %v2270, %v2270
        %v2277 = vpack.c.b16 %v2273, %v2273
        %2278 = vrot.lane.b32.xlu0 %v2274, 4
        %v2279 = vpop.permute.xlu0 %2278
        %2280 = vrot.lane.b32.xlu0 %v2275, 4
        %v2281 = vpop.permute.xlu0 %2280
        %2282 = vrot.lane.b32.xlu0 %v2276, 4
        %v2283 = vpop.permute.xlu0 %2282
        %2284 = vrot.lane.b32.xlu0 %v2277, 4
        %v2285 = vpop.permute.xlu0 %2284
        %v2290 = vperm.slane %v2155, 0
        %v2291 = vperm.slane %v2161, 0
        %v2292 = vperm.slane %v2167, 0
        %v2293 = vperm.slane %v2173, 0
        %v2294 = vunpack.c.l.b16 %v2290
        %v2295 = vunpack.c.l.b16 %v2291
        %v2296 = vunpack.c.l.b16 %v2292
        %v2297 = vunpack.c.l.b16 %v2293
        %v2298 = vsel %vm1717, %v2221, %v2220
        %v2299 = vsel %vm1721, %v2258, %v2298
        %v2300 = vsel %vm1725, %v2294, %v2299
        %v2301 = vsel %vm1717, %v2225, %v2224
        %v2302 = vsel %vm1721, %v2259, %v2301
        %v2303 = vsel %vm1725, %v2295, %v2302
        %v2304 = vsel %vm1717, %v2229, %v2228
        %v2305 = vsel %vm1721, %v2260, %v2304
        %v2306 = vsel %vm1725, %v2296, %v2305
        %v2307 = vsel %vm1717, %v2233, %v2232
        %v2308 = vsel %vm1721, %v2261, %v2307
        %v2309 = vsel %vm1725, %v2297, %v2308
        %v2310 = vpack.c.b16 %v2300, %v2300
        %v2311 = vpack.c.b16 %v2303, %v2303
        %v2312 = vpack.c.b16 %v2306, %v2306
        %v2313 = vpack.c.b16 %v2309, %v2309
        %2314 = vrot.lane.b32.xlu0 %v2310, 8
        %v2315 = vpop.permute.xlu0 %2314
        %2316 = vrot.lane.b32.xlu0 %v2311, 8
        %v2317 = vpop.permute.xlu0 %2316
        %2318 = vrot.lane.b32.xlu0 %v2312, 8
        %v2319 = vpop.permute.xlu0 %2318
        %2320 = vrot.lane.b32.xlu0 %v2313, 8
        %v2321 = vpop.permute.xlu0 %2320
        %v2326 = vperm.slane %v2174, 0
        %v2327 = vperm.slane %v2175, 0
        %v2328 = vperm.slane %v2176, 0
        %v2329 = vperm.slane %v2177, 0
        %v2330 = vunpack.c.l.b16 %v2326
        %v2331 = vunpack.c.l.b16 %v2327
        %v2332 = vunpack.c.l.b16 %v2328
        %v2333 = vunpack.c.l.b16 %v2329
        %v2334 = vsel %vm1717, %v2331, %v2330
        %v2335 = vsel %vm1721, %v2332, %v2334
        %v2336 = vsel %vm1725, %v2333, %v2335
        %v2337 = vpack.c.b16 %v2336, %v2336
        %2338 = vrot.lane.b32.xlu0 %v2247, 12
        %v2339 = vpop.permute.xlu0 %2338
        %2340 = vrot.lane.b32.xlu0 %v2248, 12
        %v2341 = vpop.permute.xlu0 %2340
        %2342 = vrot.lane.b32.xlu0 %v2249, 12
        %v2343 = vpop.permute.xlu0 %2342
        %2344 = vrot.lane.b32.xlu0 %v2337, 12
        %v2345 = vpop.permute.xlu0 %2344
        %v2347 = vperm.slane %v2178, 0
        %v2348 = vunpack.c.l.b16 %v2347
        %v2349 = vsel %vm1717, %v2332, %v2331
        %v2350 = vsel %vm1721, %v2333, %v2349
        %v2351 = vsel %vm1725, %v2348, %v2350
        %v2352 = vpack.c.b16 %v2351, %v2351
        %2353 = vrot.lane.b32.xlu0 %v2275, 16
        %v2354 = vpop.permute.xlu0 %2353
        %2355 = vrot.lane.b32.xlu0 %v2276, 16
        %v2356 = vpop.permute.xlu0 %2355
        %2357 = vrot.lane.b32.xlu0 %v2277, 16
        %v2358 = vpop.permute.xlu0 %2357
        %2359 = vrot.lane.b32.xlu0 %v2352, 16
        %v2360 = vpop.permute.xlu0 %2359
        %v2362 = vperm.slane %v2179, 0
        %v2363 = vunpack.c.l.b16 %v2362
        %v2364 = vsel %vm1717, %v2333, %v2332
        %v2365 = vsel %vm1721, %v2348, %v2364
        %v2366 = vsel %vm1725, %v2363, %v2365
        %v2367 = vpack.c.b16 %v2366, %v2366
        %2368 = vrot.lane.b32.xlu0 %v2311, 20
        %v2369 = vpop.permute.xlu0 %2368
        %2370 = vrot.lane.b32.xlu0 %v2312, 20
        %v2371 = vpop.permute.xlu0 %2370
        %2372 = vrot.lane.b32.xlu0 %v2313, 20
        %v2373 = vpop.permute.xlu0 %2372
        %2374 = vrot.lane.b32.xlu0 %v2367, 20
        %v2375 = vpop.permute.xlu0 %2374
        %v2380 = vperm.slane %v2180, 0
        %v2381 = vperm.slane %v2181, 0
        %v2382 = vperm.slane %v2182, 0
        %v2383 = vperm.slane %v2183, 0
        %v2384 = vunpack.c.l.b16 %v2380
        %v2385 = vunpack.c.l.b16 %v2381
        %v2386 = vunpack.c.l.b16 %v2382
        %v2387 = vunpack.c.l.b16 %v2383
        %v2388 = vsel %vm1717, %v2385, %v2384
        %v2389 = vsel %vm1721, %v2386, %v2388
        %v2390 = vsel %vm1725, %v2387, %v2389
        %v2391 = vpack.c.b16 %v2390, %v2390
        %2392 = vrot.lane.b32.xlu0 %v2248, 24
        %v2393 = vpop.permute.xlu0 %2392
        %2394 = vrot.lane.b32.xlu0 %v2249, 24
        %v2395 = vpop.permute.xlu0 %2394
        %2396 = vrot.lane.b32.xlu0 %v2337, 24
        %v2397 = vpop.permute.xlu0 %2396
        %2398 = vrot.lane.b32.xlu0 %v2391, 24
        %v2399 = vpop.permute.xlu0 %2398
        %v2401 = vperm.slane %v2184, 0
        %v2402 = vunpack.c.l.b16 %v2401
        %v2403 = vsel %vm1717, %v2386, %v2385
        %v2404 = vsel %vm1721, %v2387, %v2403
        %v2405 = vsel %vm1725, %v2402, %v2404
        %v2406 = vpack.c.b16 %v2405, %v2405
        %2407 = vrot.lane.b32.xlu0 %v2276, 28
        %v2408 = vpop.permute.xlu0 %2407
        %2409 = vrot.lane.b32.xlu0 %v2277, 28
        %v2410 = vpop.permute.xlu0 %2409
        %2411 = vrot.lane.b32.xlu0 %v2352, 28
        %v2412 = vpop.permute.xlu0 %2411
        %2413 = vrot.lane.b32.xlu0 %v2406, 28
        %v2414 = vpop.permute.xlu0 %2413
        %v2416 = vperm.slane %v2185, 0
        %v2417 = vunpack.c.l.b16 %v2416
        %v2418 = vsel %vm1717, %v2387, %v2386
        %v2419 = vsel %vm1721, %v2402, %v2418
        %v2420 = vsel %vm1725, %v2417, %v2419
        %v2421 = vpack.c.b16 %v2420, %v2420
        %2422 = vrot.lane.b32.xlu0 %v2312, 32
        %v2423 = vpop.permute.xlu0 %2422
        %2424 = vrot.lane.b32.xlu0 %v2313, 32
        %v2425 = vpop.permute.xlu0 %2424
        %2426 = vrot.lane.b32.xlu0 %v2367, 32
        %v2427 = vpop.permute.xlu0 %2426
        %2428 = vrot.lane.b32.xlu0 %v2421, 32
        %v2429 = vpop.permute.xlu0 %2428
        %v2432 = vsel %vm1519, %v2246, %v2279
        %v2435 = vsel %vm1519, %v2247, %v2281
        %v2438 = vsel %vm1519, %v2248, %v2283
        %v2441 = vsel %vm1519, %v2249, %v2285
        %vm2442 = vcmask 64512
        %v2444 = vsel %vm2442, %v2432, %v2315
        %v2446 = vsel %vm2442, %v2435, %v2317
        %v2448 = vsel %vm2442, %v2438, %v2319
        %v2450 = vsel %vm2442, %v2441, %v2321
        %vm2451 = vcmask 97280
        %v2453 = vsel %vm2451, %v2444, %v2339
        %v2455 = vsel %vm2451, %v2446, %v2341
        %v2457 = vsel %vm2451, %v2448, %v2343
        %v2459 = vsel %vm2451, %v2450, %v2345
        %vm2460 = vcmask 130048
        %v2462 = vsel %vm2460, %v2453, %v2354
        %v2464 = vsel %vm2460, %v2455, %v2356
        %v2466 = vsel %vm2460, %v2457, %v2358
        %v2468 = vsel %vm2460, %v2459, %v2360
        %vm2469 = vcmask 162816
        %v2471 = vsel %vm2469, %v2462, %v2369
        %v2473 = vsel %vm2469, %v2464, %v2371
        %v2475 = vsel %vm2469, %v2466, %v2373
        %v2477 = vsel %vm2469, %v2468, %v2375
        %vm2478 = vcmask 195584
        %v2480 = vsel %vm2478, %v2471, %v2393
        %v2482 = vsel %vm2478, %v2473, %v2395
        %v2484 = vsel %vm2478, %v2475, %v2397
        %v2486 = vsel %vm2478, %v2477, %v2399
        %vm2487 = vcmask 228352
        %v2489 = vsel %vm2487, %v2480, %v2408
        %v2491 = vsel %vm2487, %v2482, %v2410
        %v2493 = vsel %vm2487, %v2484, %v2412
        %v2495 = vsel %vm2487, %v2486, %v2414
        %vm2496 = vcmask 261120
        %v2498 = vsel %vm2496, %v2489, %v2423
        %v2500 = vsel %vm2496, %v2491, %v2425
        %v2502 = vsel %vm2496, %v2493, %v2427
        %v2504 = vsel %vm2496, %v2495, %v2429
        %s2505 = sadd.s32 %s21, 2
        %p2506 = scmp.lt.s32.totalorder %s2505, 0
        %s2507 = ssub.s32 0, %s2505
        %s2508 = scalar_select %p2506, %s2507, %s2505
        %s2509 = sdiv.u32.pop %s2508, 3
        %s2510 = srem.u32.pop %s2508, 3
        %s2511 = ssub.s32 0, %s2510
        %s2512 = scalar_select %p2506, %s2511, %s2510
        %p2513 = scmp.ne.s32.totalorder %s2512, 0
        %p2514 = scmp.lt.s32.totalorder %s2512, 0
        %p2515 = pnand %p2514, %p2513
        %p2516 = pneg %p2515
        %s2517 = sadd.s32 %s2512, 3
        %s2518 = scalar_select %p2516, %s2517, %s2512
        %p2519 = scmp.eq.s32.totalorder %s2518, 0
        // Predicated region
        $region45: #{downsample_forward.1} parent=39 // pred_check
          %p2520 = pneg %p2519
        $region46: #{downsample_forward.1} parent=39 // pred_check_branch
          %2522 = sbr.rel (%p2520) target = $region48
        $region47: #{downsample_forward.1} parent=39 // pred_region
          %2523 = vst [vmem:[#allocation1] ss:$2 sm:$0xff] %v2498
          %s2524 = scalar_lea.vmem [#allocation1], 1
          %2525 = vst [vmem:[%s2524] ss:$2 sm:$0xff] %v2500
          %s2526 = scalar_lea.vmem [#allocation1], 16
          %2527 = vst [vmem:[%s2526] ss:$2 sm:$0xff] %v2502
          %s2528 = scalar_lea.vmem [#allocation1], 17
          %2529 = vst [vmem:[%s2528] ss:$2 sm:$0xff] %v2504
          %v2530 = vld.sshfl [vmem:[#allocation1] sm:$0xff pattern:$0x75643120]
          %v2531 = vld.sshfl [vmem:[#allocation1 + $0x10] sm:$0xff pattern:$0x75643120]
          %vm2534 = vcmask 289792
          %2535 = vst.msk [vmem:[#allocation2] sm:$0xf] %vm2534, %v2530
          %2536 = vst.msk [vmem:[#allocation2 + $0x4] sm:$0xf] %vm2534, %v2531
        $region48: #{downsample_forward.1} parent=39 // pred_fallthru
          _
        %p2537 = scmp.eq.s32.totalorder %s2518, 1
        // Predicated region
        $region49: #{downsample_forward.1} parent=39 // pred_check
          %p2538 = pneg %p2537
        $region50: #{downsample_forward.1} parent=39 // pred_check_branch
          %2540 = sbr.rel (%p2538) target = $region52
        $region51: #{downsample_forward.1} parent=39 // pred_region
          %2541 = vst [vmem:[#allocation1] ss:$2 sm:$0xff] %v2498
          %s2542 = scalar_lea.vmem [#allocation1], 1
          %2543 = vst [vmem:[%s2542] ss:$2 sm:$0xff] %v2500
          %s2544 = scalar_lea.vmem [#allocation1], 16
          %2545 = vst [vmem:[%s2544] ss:$2 sm:$0xff] %v2502
          %s2546 = scalar_lea.vmem [#allocation1], 17
          %2547 = vst [vmem:[%s2546] ss:$2 sm:$0xff] %v2504
          %v2548 = vld.sshfl [vmem:[#allocation1] sm:$0xff pattern:$0x75643120]
          %v2549 = vld.sshfl [vmem:[#allocation1 + $0x10] sm:$0xff pattern:$0x75643120]
          %s2552 = scalar_lea.vmem [#allocation2], 8
          %vm2553 = vcmask 289792
          %2554 = vst.msk [vmem:[%s2552] sm:$0xf] %vm2553, %v2548
          %2555 = vst.msk [vmem:[%s2552 + $0x4] sm:$0xf] %vm2553, %v2549
        $region52: #{downsample_forward.1} parent=39 // pred_fallthru
          _
        %p2556 = scmp.eq.s32.totalorder %s2518, 2
        // Predicated region
        $region53: #{downsample_forward.1} parent=39 // pred_check
          %p2557 = pneg %p2556
        $region54: #{downsample_forward.1} parent=39 // pred_check_branch
          %2559 = sbr.rel (%p2557) target = $region56
        $region55: #{downsample_forward.1} parent=39 // pred_region
          %2560 = vst [vmem:[#allocation1] ss:$2 sm:$0xff] %v2498
          %s2561 = scalar_lea.vmem [#allocation1], 1
          %2562 = vst [vmem:[%s2561] ss:$2 sm:$0xff] %v2500
          %s2563 = scalar_lea.vmem [#allocation1], 16
          %2564 = vst [vmem:[%s2563] ss:$2 sm:$0xff] %v2502
          %s2565 = scalar_lea.vmem [#allocation1], 17
          %2566 = vst [vmem:[%s2565] ss:$2 sm:$0xff] %v2504
          %v2567 = vld.sshfl [vmem:[#allocation1] sm:$0xff pattern:$0x75643120]
          %v2568 = vld.sshfl [vmem:[#allocation1 + $0x10] sm:$0xff pattern:$0x75643120]
          %s2571 = scalar_lea.vmem [#allocation2], 16
          %vm2572 = vcmask 289792
          %2573 = vst.msk [vmem:[%s2571] sm:$0xf] %vm2572, %v2567
          %2574 = vst.msk [vmem:[%s2571 + $0x4] sm:$0xf] %vm2572, %v2568
        $region56: #{downsample_forward.1} parent=39 // pred_fallthru
          _
      $region40: #{downsample_forward.1} parent=35 // pred_fallthru
        _
      %p2575 = scmp.lt.s32.totalorder %s21, 0
      %s2576 = ssub.s32 0, %s21
      %s2577 = scalar_select %p2575, %s2576, %s21
      %s2578 = sdiv.u32.pop %s2577, 3
      %s2579 = srem.u32.pop %s2577, 3
      %s2580 = ssub.s32 0, %s2579
      %s2581 = scalar_select %p2575, %s2580, %s2579
      %p2582 = scmp.ne.s32.totalorder %s2581, 0
      %p2583 = scmp.lt.s32.totalorder %s2581, 0
      %p2584 = pnand %p2583, %p2582
      %p2585 = pneg %p2584
      %s2586 = sadd.s32 %s2581, 3
      %s2587 = scalar_select %p2585, %s2586, %s2581
      %s2588 = smul.u32 %s2587, 2
      %s2589 = smul.addr %s2588, 4
      %s2590 = scalar_lea.vmem [#allocation2], %s2589
      %v2591 = vld [vmem:[%s2590] sm:$0xf]
      %v2592 = vld [vmem:[%s2590 + $0x4] sm:$0xf]
      %v2593 = vld [vmem:[%s299] sm:$0xf]
      %v2594 = vld [vmem:[%s299 + $0x4] sm:$0xf]
      %v2595 = vld [vmem:[%s299 + $0x8] sm:$0xf]
      %v2596 = vld [vmem:[%s299 + $0xc] sm:$0xf]
      %v2597 = vld [vmem:[%s299 + $0x10] sm:$0x3]
      %s2598 = sadd.s32 %s21, 1
      %p2599 = scmp.lt.s32.totalorder %s2598, 0
      %s2600 = ssub.s32 0, %s2598
      %s2601 = scalar_select %p2599, %s2600, %s2598
      %s2602 = sdiv.u32.pop %s2601, 3
      %s2603 = srem.u32.pop %s2601, 3
      %s2604 = ssub.s32 0, %s2603
      %s2605 = scalar_select %p2599, %s2604, %s2603
      %p2606 = scmp.ne.s32.totalorder %s2605, 0
      %p2607 = scmp.lt.s32.totalorder %s2605, 0
      %p2608 = pnand %p2607, %p2606
      %p2609 = pneg %p2608
      %s2610 = sadd.s32 %s2605, 3
      %s2611 = scalar_select %p2609, %s2610, %s2605
      %s2612 = smul.u32 %s2611, 2
      %s2613 = smul.addr %s2612, 4
      %s2614 = scalar_lea.vmem [#allocation2], %s2613
      %v2615 = vld [vmem:[%s2614] sm:$0xf]
      %v2616 = vld [vmem:[%s2614 + $0x4] sm:$0xf]
      %s2617 = scalar_lea.vmem %s299, 20
      %v2618 = vld [vmem:[%s2617] sm:$0xf]
      %v2619 = vld [vmem:[%s2617 + $0x4] sm:$0xf]
      %v2620 = vld [vmem:[%s2617 + $0x8] sm:$0xf]
      %v2621 = vld [vmem:[%s2617 + $0xc] sm:$0xf]
      %v2622 = vld [vmem:[%s2617 + $0x10] sm:$0x3]
      %v2625 = vunpack.c.l.b16 %v2615
      %v2626 = vunpack.c.l.b16 %v2616
      %v2627 = vpack.c.b16 %v2626, %v2625
      %v2633 = vunpack.c.l.b16 %v2618
      %v2634 = vunpack.c.l.b16 %v2619
      %v2635 = vunpack.c.l.b16 %v2620
      %v2636 = vunpack.c.l.b16 %v2621
      %v2637 = vunpack.c.l.b16 %v2622
      %v2638 = vpack.c.b16 %v2634, %v2633
      %v2639 = vpack.c.b16 %v2636, %v2635
      %v2640 = vpack.c.b16 %v2637, %v2637
      %vm2643 = vcmask 293888
      %v2645 = vsel %vm2643, %v2627, 0
      %vm2647 = vcmask 1041408
      %v2649 = vsel %vm2647, %v2640, 0
      %2651 = vmatpush.bf16.msra.mxu0 0
      %2652 = vmatpush.bf16.msra.mxu0 0
      %2653 = vmatpush.bf16.msra.mxu0 0
      %2654 = vmatpush.bf16.msra.mxu0 0
      %2655 = vmatpush.bf16.msra.mxu0 0
      %2656 = vmatpush.bf16.msra.mxu0 %v2649
      %2657 = vmatpush.bf16.msra.mxu0 %v2639
      %2658 = vmatpush.bf16.msra.mxu0 %v2638
      %2659 = vmatmul.bf16.gmra.mxu0 %v2645
      %v2660 = vpop.f32.mrf.mxu0
      %v2661 = vadd.f32 0.0, %v2660
      %v2662 = vpop.f32.mrf.mxu0
      %v2663 = vadd.f32 0.0, %v2662
      %2664 = vdwg.mxu0
      %v2667 = vunpack.c.l.b16 %v2591
      %v2668 = vunpack.c.l.b16 %v2592
      %v2669 = vpack.c.b16 %v2668, %v2667
      %v2675 = vunpack.c.l.b16 %v2593
      %v2676 = vunpack.c.l.b16 %v2594
      %v2677 = vunpack.c.l.b16 %v2595
      %v2678 = vunpack.c.l.b16 %v2596
      %v2679 = vunpack.c.l.b16 %v2597
      %v2680 = vpack.c.b16 %v2676, %v2675
      %v2681 = vpack.c.b16 %v2678, %v2677
      %v2682 = vpack.c.b16 %v2679, %v2679
      %v2686 = vsel %vm2643, %v2669, 0
      %v2689 = vsel %vm2647, %v2682, 0
      %2691 = vmatpush.bf16.msra.mxu0 0
      %2692 = vmatpush.bf16.msra.mxu0 0
      %2693 = vmatpush.bf16.msra.mxu0 0
      %2694 = vmatpush.bf16.msra.mxu0 0
      %2695 = vmatpush.bf16.msra.mxu0 0
      %2696 = vmatpush.bf16.msra.mxu0 %v2689
      %2697 = vmatpush.bf16.msra.mxu0 %v2681
      %2698 = vmatpush.bf16.msra.mxu0 %v2680
      %2699 = vmatmul.bf16.gmra.mxu0 %v2686
      %v2700 = vpop.f32.mrf.mxu0
      %v2701 = vadd.f32 %v2661, %v2700
      %v2702 = vpop.f32.mrf.mxu0
      %v2703 = vadd.f32 %v2663, %v2702
      %2704 = vdwg.mxu0
      %s2705 = sadd.s32 %s21, 2
      %p2706 = scmp.lt.s32.totalorder %s2705, 0
      %s2707 = ssub.s32 0, %s2705
      %s2708 = scalar_select %p2706, %s2707, %s2705
      %s2709 = sdiv.u32.pop %s2708, 3
      %s2710 = srem.u32.pop %s2708, 3
      %s2711 = ssub.s32 0, %s2710
      %s2712 = scalar_select %p2706, %s2711, %s2710
      %p2713 = scmp.ne.s32.totalorder %s2712, 0
      %p2714 = scmp.lt.s32.totalorder %s2712, 0
      %p2715 = pnand %p2714, %p2713
      %p2716 = pneg %p2715
      %s2717 = sadd.s32 %s2712, 3
      %s2718 = scalar_select %p2716, %s2717, %s2712
      %s2719 = smul.u32 %s2718, 2
      %s2720 = smul.addr %s2719, 4
      %s2721 = scalar_lea.vmem [#allocation2], %s2720
      %v2722 = vld [vmem:[%s2721] sm:$0xf]
      %v2723 = vld [vmem:[%s2721 + $0x4] sm:$0xf]
      %s2724 = scalar_lea.vmem %s299, 40
      %v2725 = vld [vmem:[%s2724] sm:$0xf]
      %v2726 = vld [vmem:[%s2724 + $0x4] sm:$0xf]
      %v2727 = vld [vmem:[%s2724 + $0x8] sm:$0xf]
      %v2728 = vld [vmem:[%s2724 + $0xc] sm:$0xf]
      %v2729 = vld [vmem:[%s2724 + $0x10] sm:$0x3]
      %v2732 = vunpack.c.l.b16 %v2722
      %v2733 = vunpack.c.l.b16 %v2723
      %v2734 = vpack.c.b16 %v2733, %v2732
      %v2740 = vunpack.c.l.b16 %v2725
      %v2741 = vunpack.c.l.b16 %v2726
      %v2742 = vunpack.c.l.b16 %v2727
      %v2743 = vunpack.c.l.b16 %v2728
      %v2744 = vunpack.c.l.b16 %v2729
      %v2745 = vpack.c.b16 %v2741, %v2740
      %v2746 = vpack.c.b16 %v2743, %v2742
      %v2747 = vpack.c.b16 %v2744, %v2744
      %v2751 = vsel %vm2643, %v2734, 0
      %v2754 = vsel %vm2647, %v2747, 0
      %2756 = vmatpush.bf16.msra.mxu0 0
      %2757 = vmatpush.bf16.msra.mxu0 0
      %2758 = vmatpush.bf16.msra.mxu0 0
      %2759 = vmatpush.bf16.msra.mxu0 0
      %2760 = vmatpush.bf16.msra.mxu0 0
      %2761 = vmatpush.bf16.msra.mxu0 %v2754
      %2762 = vmatpush.bf16.msra.mxu0 %v2746
      %2763 = vmatpush.bf16.msra.mxu0 %v2745
      %2764 = vmatmul.bf16.gmra.mxu0 %v2751
      %v2765 = vpop.f32.mrf.mxu0
      %v2766 = vadd.f32 0.0, %v2765
      %v2767 = vpop.f32.mrf.mxu0
      %v2768 = vadd.f32 0.0, %v2767
      %2769 = vdwg.mxu0
      %v2770 = vadd.f32 %v2701, %v2766
      %v2771 = vadd.f32 %v2703, %v2768
      %v2772 = vld [vmem:[%s302] sm:$0x1]
      %v2774 = vperm.slane %v2772, 0
      %v2776 = vadd.f32 %v2770, %v2774
      %v2777 = vadd.f32 %v2771, %v2774
      %2778 = vst [vmem:[%s314] sm:$0xff] %v2776
      %2779 = vst [vmem:[%s314 + $0x8] sm:$0xff] %v2777
      %p2780 = scmp.lt.s32.totalorder %s20, 1
      %s2781 = scalar_select %p2780, %s20, 1
      %p2782 = scmp.lt.s32.totalorder %s21, 3
      %s2783 = scalar_select %p2782, %s21, 3
      %p2784 = scmp.lt.s32.totalorder %s22, 0
      %s2785 = scalar_select %p2784, %s22, 0
      %s2786 = smul.addr %s2783, 2
      %s2787 = sadd.s32 %s2785, %s2786
      %s2788 = smul.addr %s2781, 8
      %s2789 = sadd.s32 %s2787, %s2788
      %s2790 = smul.addr %s2789, 8
      %s2791 = scalar_lea.vmem %s4, %s2790
      // Predicated region
      $region57: #{downsample_forward.1} parent=35 // pred_check
        %p2792 = pneg %p164
      $region58: #{downsample_forward.1} parent=35 // pred_check_branch
        %2794 = sbr.rel (%p2792) target = $region60
      $region59: #{downsample_forward.1} parent=35 // pred_region
        _
      $region60: #{downsample_forward.1} parent=35 // pred_fallthru
        _
    $region36: #{downsample_forward.1} parent=5 // pred_fallthru
      _
    %p2795 = scmp.le.s32.totalorder 2, %s10
    // Predicated region
    $region61: #{downsample_forward.1} parent=5 // pred_check
      %p2796 = pneg %p2795
    $region62: #{downsample_forward.1} parent=5 // pred_check_branch
      %2798 = sbr.rel (%p2796) target = $region64
    $region63: #{downsample_forward.1} parent=5 // pred_region
      %s2799 = ssub.s32 %s10, 2
      // Predicated region
      $region65: #{downsample_forward.1} parent=63 // pred_check
        %p2800 = pneg %p170
      $region66: #{downsample_forward.1} parent=63 // pred_check_branch
        %2802 = sbr.rel (%p2800) target = $region68
      $region67: #{downsample_forward.1} parent=63 // pred_region
        %p2803 = scmp.lt.s32.totalorder %s23, 1
        %s2804 = scalar_select %p2803, %s23, 1
        %p2805 = scmp.lt.s32.totalorder %s24, 3
        %s2806 = scalar_select %p2805, %s24, 3
        %p2807 = scmp.lt.s32.totalorder %s25, 0
        %s2808 = scalar_select %p2807, %s25, 0
        %s2809 = smul.addr %s2806, 2
        %s2810 = sadd.s32 %s2808, %s2809
        %s2811 = smul.addr %s2804, 8
        %s2812 = sadd.s32 %s2810, %s2811
        %s2813 = smul.addr %s2812, 8
        %s2814 = scalar_lea.vmem %s4, %s2813
      $region68: #{downsample_forward.1} parent=63 // pred_fallthru
        _
    $region64: #{downsample_forward.1} parent=5 // pred_fallthru
      _
  $region6: #{downsample_forward.1} parent=0 // loop_footer
    %s14 = sadd.s32 1, %s10
  $region7: #{downsample_forward.1} parent=0 // loop_footer_branch
    %9 = sbr.rel target = $region3
  $region8: #{downsample_forward.1} parent=0 // loop_exit
    _

</llo_original>
